<compile_context>
chip_gen: v5e
topology: v5e:2x2
jax: 0.10.0
libtpu: 0.0.40
codegen_flags: <defaults>
</compile_context>

<pallas_src>
import jax
import jax.numpy as jnp
from jax import lax
from jax.experimental import pallas as pl
from jax.experimental.pallas import tpu as pltpu

_LANE = 128
_NEG_BIG = -1e30  # effectively -inf bias for padded vocab columns


def _decoder_head_kernel(x_ref, w1_ref, b1_ref, lnw_ref, lnb_ref,
                         w2_ref, b2_ref, labels_ref,
                         logits_ref, nll_ref,
                         h_scratch, m_scratch, l_scratch, lbl_scratch):
    j = pl.program_id(1)
    num_v = pl.num_programs(1)
    tm, tv = logits_ref.shape
    n_chunks = tv // _LANE

    # ---- transform: run once per row block, cache result across vocab tiles ----
    @pl.when(j == 0)
    def _():
        x = x_ref[...].astype(jnp.bfloat16)              # f32 in HBM, cast after load
        h = jnp.dot(x, w1_ref[...], preferred_element_type=jnp.float32) + b1_ref[...]
        # exact (erf) gelu, as in BERT
        h = h * 0.5 * (1.0 + lax.erf(h * 0.7071067811865476))
        # LayerNorm(eps=1e-12), statistics in f32
        mean = jnp.mean(h, axis=-1, keepdims=True)
        var = jnp.mean(jnp.square(h - mean), axis=-1, keepdims=True)
        h = (h - mean) * lax.rsqrt(var + 1e-12)
        h = h * lnw_ref[...] + lnb_ref[...]
        h_scratch[...] = h.astype(h_scratch.dtype)       # bf16 cache
        # init lane-partial online-logsumexp state
        m_scratch[...] = jnp.full_like(m_scratch, -jnp.inf)
        l_scratch[...] = jnp.zeros_like(l_scratch)
        lbl_scratch[...] = jnp.zeros_like(lbl_scratch)
        nll_ref[...] = jnp.zeros_like(nll_ref)

    # ---- decoder GEMM on this vocab tile (bf16 MXU, f32 accumulation) ----
    logits = jnp.dot(h_scratch[...], w2_ref[...],
                     preferred_element_type=jnp.float32) + b2_ref[...]
    logits_ref[...] = logits.astype(logits_ref.dtype)

    # ---- online softmax statistics, kept lane-partial (128 streams per row) ----
    # per-lane max of this tile: VPU elementwise maxima over tv/128 lane chunks
    tile_max = logits[:, 0:_LANE]
    for c in range(1, n_chunks):
        tile_max = jnp.maximum(tile_max, logits[:, c * _LANE:(c + 1) * _LANE])
    m_old = m_scratch[...]
    m_new = jnp.maximum(m_old, tile_max)
    l_new = l_scratch[...] * jnp.exp(m_old - m_new)
    lbl_new = lbl_scratch[...]

    labels = labels_ref[...]                             # (tm, 1) int32
    lab_shift = labels - j * tv                          # label index within this tile
    lane_iota = lax.broadcasted_iota(jnp.int32, (tm, _LANE), 1)
    for c in range(n_chunks):
        chunk = logits[:, c * _LANE:(c + 1) * _LANE]
        l_new = l_new + jnp.exp(chunk - m_new)
        lbl_new = lbl_new + jnp.where(lane_iota == (lab_shift - c * _LANE), chunk, 0.0)

    m_scratch[...] = m_new
    l_scratch[...] = l_new
    lbl_scratch[...] = lbl_new

    # ---- finalize: single cross-lane XLU reduce per row block ----
    @pl.when(j == num_v - 1)
    def _():
        m_run = m_scratch[...]
        row_max = jnp.max(m_run, axis=-1, keepdims=True)
        row_sum = jnp.sum(l_scratch[...] * jnp.exp(m_run - row_max),
                          axis=-1, keepdims=True)
        lbl_logit = jnp.sum(lbl_scratch[...], axis=-1, keepdims=True)
        valid = (labels != -100).astype(jnp.float32)
        lse = row_max + jnp.log(row_sum)
        # TODO(synk): NLL is a 1-lane (tm,1) masked store; widening it is a
        # micro-optimization deferred until the structural items are profiled.
        nll_ref[...] = (lse - lbl_logit) * valid


def _round_up(x, m):
    return ((x + m - 1) // m) * m


def _select_tiles(N, H, V, vmem_budget, logits_itemsize):
    """Pick (tm, tv): largest MXU-friendly tiles that keep the double-buffered
    working set under the per-generation VMEM budget, with >= 2 row blocks so
    the "parallel" row axis can split across v7x's two TensorCores."""
    row_align = 256 if N >= 256 else 8       # 256-aligned for v6e/v7x MXU; small N stays small
    tm = min(1024, _round_up(max(N, row_align), row_align))
    tv = min(2048, _round_up(max(V, _LANE), _LANE))

    def est(tm_, tv_):
        return (2 * tm_ * H * 4                       # x blocks (f32, double-buffered)
                + 2 * H * H * 2                       # w1 blocks (bf16)
                + 2 * H * tv_ * 2                     # w2 blocks (bf16)
                + 2 * tm_ * tv_ * logits_itemsize     # logits out blocks
                + tm_ * tv_ * 4                       # in-kernel f32 logits temporary
                + tm_ * H * 2                         # cached transform scratch (bf16)
                + 3 * tm_ * _LANE * 4                 # lane-partial m / l / label scratch
                + 2 * (3 * H + tv_ + 2 * tm_) * 4)    # biases / labels / nll blocks

    while est(tm, tv) > vmem_budget:
        if tv >= tm and tv > _LANE:
            tv = max(_LANE, (tv // 2) // _LANE * _LANE)
        elif tm > row_align:
            tm = max(row_align, tm - row_align)
        else:
            break

    # v7x megacore: ensure the row axis has at least two blocks when N allows it.
    if N > 2 * row_align and _round_up(N, tm) == tm:
        tm = _round_up((N + 1) // 2, row_align)
    return tm, tv


def prepare_params(params):
    """One-time parameter prep: cast the MXU operands (w1 and the big HxV decoder
    weight) to bf16 ONCE instead of per call, keep biases/LN params in f32."""
    H = params["w1"].shape[0]
    V = params["w2"].shape[1]
    return {
        "w1": params["w1"].astype(jnp.bfloat16),
        "b1": params["b1"].reshape(1, H).astype(jnp.float32),
        "ln_w": params["ln_w"].reshape(1, H).astype(jnp.float32),
        "ln_b": params["ln_b"].reshape(1, H).astype(jnp.float32),
        "w2": params["w2"].astype(jnp.bfloat16),
        "b2": params["b2"].reshape(1, V).astype(jnp.float32),
    }


def my_decoder_head(sequence_output, masked_lm_labels, params, *,
                    tm=None, tv=None, logits_dtype=jnp.float32):
    """sequence_output: (B, S, H) f32; masked_lm_labels: (B, S) int.
    Returns (masked_lm_loss, prediction_scores) like the PyTorch module.
    Pass logits_dtype=jnp.bfloat16 to halve the (N, V) prediction-scores HBM
    writeback (loss statistics stay f32 either way)."""
    B, S, H = sequence_output.shape
    V = params["w2"].shape[1]
    N = B * S

    # Generation-aware VMEM budget: 75% of capacity (v7x 64 MiB -> ~48 MiB,
    # v5e/v6e 128 MiB -> ~96 MiB), leaving headroom for compiler scratch.
    vmem_cap = 64 * 1024 * 1024
    try:
        vmem_cap = int(pltpu.get_tpu_info().vmem_capacity_bytes)
    except Exception:
        pass
    vmem_budget = int(vmem_cap * 3 // 4)

    logits_itemsize = jnp.dtype(logits_dtype).itemsize
    if tm is None or tv is None:
        tm_auto, tv_auto = _select_tiles(N, H, V, vmem_budget, logits_itemsize)
        tm = tm if tm is not None else tm_auto
        tv = tv if tv is not None else tv_auto
    assert tm % 8 == 0, "row tile must be a multiple of 8"
    assert tv % _LANE == 0, "vocab tile must be a multiple of 128"

    # Pad rows (ignored labels) and vocab (-1e30 bias -> contributes 0 to softmax)
    # so tiles never need to divide the true problem size.
    N_pad = _round_up(N, tm)
    V_pad = _round_up(V, tv)

    x = sequence_output.reshape(N, H).astype(jnp.float32)   # no bf16 copy in HBM
    labels_flat = masked_lm_labels.reshape(N).astype(jnp.int32)
    if N_pad != N:
        x = jnp.pad(x, ((0, N_pad - N), (0, 0)))
        labels_flat = jnp.pad(labels_flat, (0, N_pad - N), constant_values=-100)
    labels2d = labels_flat.reshape(N_pad, 1)

    w1 = params["w1"]
    w2 = params["w2"]
    w1 = w1 if w1.dtype == jnp.bfloat16 else w1.astype(jnp.bfloat16)
    w2 = w2 if w2.dtype == jnp.bfloat16 else w2.astype(jnp.bfloat16)
    b1 = params["b1"].reshape(1, H).astype(jnp.float32)
    ln_w = params["ln_w"].reshape(1, H).astype(jnp.float32)
    ln_b = params["ln_b"].reshape(1, H).astype(jnp.float32)
    b2 = params["b2"].reshape(1, V).astype(jnp.float32)
    if V_pad != V:
        w2 = jnp.pad(w2, ((0, 0), (0, V_pad - V)))
        b2 = jnp.pad(b2, ((0, 0), (0, V_pad - V)), constant_values=_NEG_BIG)

    grid = (N_pad // tm, V_pad // tv)

    logits, nll = pl.pallas_call(
        _decoder_head_kernel,
        grid_spec=pltpu.PrefetchScalarGridSpec(
            num_scalar_prefetch=0,
            grid=grid,
            in_specs=[
                pl.BlockSpec((tm, H), lambda i, j: (i, 0)),    # x row block (f32)
                pl.BlockSpec((H, H), lambda i, j: (0, 0)),     # w1 (in, out) bf16
                pl.BlockSpec((1, H), lambda i, j: (0, 0)),     # b1
                pl.BlockSpec((1, H), lambda i, j: (0, 0)),     # ln weight
                pl.BlockSpec((1, H), lambda i, j: (0, 0)),     # ln bias
                # If xprof shows the w2 DMA still exposed after enlarging tm,
                # add pipeline_mode=pl.Buffered(3) here.
                pl.BlockSpec((H, tv), lambda i, j: (0, j)),    # w2 vocab tile bf16
                pl.BlockSpec((1, tv), lambda i, j: (0, j)),    # decoder bias tile
                pl.BlockSpec((tm, 1), lambda i, j: (i, 0)),    # labels row block
            ],
            out_specs=[
                pl.BlockSpec((tm, tv), lambda i, j: (i, j)),   # prediction scores
                pl.BlockSpec((tm, 1), lambda i, j: (i, 0)),    # per-row NLL
            ],
            scratch_shapes=[
                pltpu.VMEM((tm, H), jnp.bfloat16),     # cached transform output h
                pltpu.VMEM((tm, _LANE), jnp.float32),  # lane-partial running max
                pltpu.VMEM((tm, _LANE), jnp.float32),  # lane-partial running sum-exp
                pltpu.VMEM((tm, _LANE), jnp.float32),  # lane-partial label-logit acc
            ],
        ),
        out_shape=(
            jax.ShapeDtypeStruct((N_pad, V_pad), logits_dtype),
            jax.ShapeDtypeStruct((N_pad, 1), jnp.float32),
        ),
        compiler_params=pltpu.CompilerParams(
            # NOTE: vocab axis must stay last and "arbitrary" — the nll/logsumexp
            # scratch is carried across it and finalized at the last vocab tile.
            dimension_semantics=("parallel", "arbitrary"),
            vmem_limit_bytes=vmem_budget,
        ),
    )(x, w1, b1, ln_w, ln_b, w2, b2, labels2d)

    # Mean over non-ignored positions (PyTorch CrossEntropyLoss(ignore_index=-100);
    # all-ignored gives 0/0 = NaN, same as PyTorch). Padded rows have NLL == 0.
    count = jnp.sum((masked_lm_labels.reshape(-1) != -100).astype(jnp.float32))
    loss = jnp.sum(nll[:N]) / count
    scores = logits[:N, :V].reshape(B, S, V)
    return loss, scores


def init_params(key, hidden_size, vocab_size):
    """Deterministic init matching MyDecoderHead._init_weights:
       Linear weights ~ N(0, 0.02), biases 0, LayerNorm weight 1 / bias 0.
       Weights stored pre-transposed as (in, out) for x @ W layout."""
    k1, k2 = jax.random.split(key, 2)
    return {
        "w1": 0.02 * jax.random.normal(k1, (hidden_size, hidden_size), jnp.float32),
        "b1": jnp.zeros((1, hidden_size), jnp.float32),
        "ln_w": jnp.ones((1, hidden_size), jnp.float32),
        "ln_b": jnp.zeros((1, hidden_size), jnp.float32),
        "w2": 0.02 * jax.random.normal(k2, (hidden_size, vocab_size), jnp.float32),
        "b2": jnp.zeros((1, vocab_size), jnp.float32),
    }


def _reference(sequence_output, masked_lm_labels, params):
    """Pure-JAX f32 reference of the PyTorch forward (for a sanity check)."""
    B, S, H = sequence_output.shape
    V = params["w2"].shape[1]
    x = sequence_output.reshape(-1, H).astype(jnp.float32)
    labels = masked_lm_labels.reshape(-1)
    h = x @ params["w1"] + params["b1"]
    h = h * 0.5 * (1.0 + lax.erf(h * 0.7071067811865476))
    mean = h.mean(-1, keepdims=True)
    var = ((h - mean) ** 2).mean(-1, keepdims=True)
    h = (h - mean) / jnp.sqrt(var + 1e-12)
    h = h * params["ln_w"] + params["ln_b"]
    logits = h @ params["w2"] + params["b2"]
    m = logits.max(-1, keepdims=True)
    lse = (m + jnp.log(jnp.exp(logits - m).sum(-1, keepdims=True)))[:, 0]
    lbl = jnp.take_along_axis(logits, jnp.maximum(labels, 0)[:, None], axis=-1)[:, 0]
    valid = labels != -100
    nll = jnp.where(valid, lse - lbl, 0.0)
    loss = nll.sum() / valid.sum()
    return loss, logits.reshape(B, S, V)


if __name__ == "__main__":
    key = jax.random.PRNGKey(0)
    kx, kl, kp, kx2, kl2, kp2 = jax.random.split(key, 6)

    # --- case 1: aligned shapes, explicit small tiles -> 2x2 grid, f32 scores ---
    B, S, H, V = 2, 64, 128, 512
    seq = jax.random.normal(kx, (B, S, H), jnp.float32)
    labels = jax.random.randint(kl, (B, S), 0, V, jnp.int32)
    labels = labels.at[0, 0].set(-100).at[1, 3].set(-100)
    params = init_params(kp, H, V)
    prepared = prepare_params(params)      # bf16 weight cast done once, not per call

    loss, scores = my_decoder_head(seq, labels, prepared, tm=64, tv=256)
    jax.block_until_ready((loss, scores))
    assert scores.shape == (B, S, V) and loss.shape == ()
    assert bool(jnp.isfinite(loss))
    ref_loss, ref_scores = _reference(seq, labels, params)
    # Loose tolerance: the kernel feeds the MXU in bf16 (accumulation in f32).
    assert jnp.allclose(loss, ref_loss, rtol=5e-2, atol=5e-2), (loss, ref_loss)
    assert jnp.allclose(scores, ref_scores, rtol=5e-2, atol=5e-2)

    # --- case 2: ragged N and V (padded inside the wrapper), auto tile selection ---
    B2, S2, H2, V2 = 2, 24, 128, 333
    seq2 = jax.random.normal(kx2, (B2, S2, H2), jnp.float32)
    labels2 = jax.random.randint(kl2, (B2, S2), 0, V2, jnp.int32)
    labels2 = labels2.at[0, 5].set(-100)
    params2 = init_params(kp2, H2, V2)
    loss2, scores2 = my_decoder_head(seq2, labels2, prepare_params(params2))
    jax.block_until_ready((loss2, scores2))
    ref_loss2, ref_scores2 = _reference(seq2, labels2, params2)
    assert scores2.shape == (B2, S2, V2)
    assert jnp.allclose(loss2, ref_loss2, rtol=5e-2, atol=5e-2), (loss2, ref_loss2)
    assert jnp.allclose(scores2, ref_scores2, rtol=5e-2, atol=5e-2)

    # --- case 3: bf16 prediction_scores (halves the dominant (N,V) HBM writeback) ---
    loss3, scores3 = my_decoder_head(seq, labels, prepared, tm=64, tv=256,
                                     logits_dtype=jnp.bfloat16)
    jax.block_until_ready((loss3, scores3))
    assert scores3.dtype == jnp.bfloat16
    assert jnp.allclose(loss3, ref_loss, rtol=5e-2, atol=5e-2), (loss3, ref_loss)

    print("KERNEL_OK")
</pallas_src>

<mosaic_0001>
module attributes {stable_mosaic.version = 11 : i64} {
  func.func @_decoder_head_kernel(%arg0: i32, %arg1: i32, %arg2: memref<64x128xf32, #tpu.memory_space<vmem>>, %arg3: memref<128x128xbf16, #tpu.memory_space<vmem>>, %arg4: memref<1x128xf32, #tpu.memory_space<vmem>>, %arg5: memref<1x128xf32, #tpu.memory_space<vmem>>, %arg6: memref<1x128xf32, #tpu.memory_space<vmem>>, %arg7: memref<128x256xbf16, #tpu.memory_space<vmem>>, %arg8: memref<1x256xf32, #tpu.memory_space<vmem>>, %arg9: memref<64x1xi32, #tpu.memory_space<vmem>>, %arg10: memref<64x256xf32, #tpu.memory_space<vmem>>, %arg11: memref<64x1xf32, #tpu.memory_space<vmem>>, %arg12: memref<64x128xbf16, #tpu.memory_space<vmem>>, %arg13: memref<64x128xf32, #tpu.memory_space<vmem>>, %arg14: memref<64x128xf32, #tpu.memory_space<vmem>>, %arg15: memref<64x128xf32, #tpu.memory_space<vmem>>) attributes {dimension_semantics = [#tpu.dimension_semantics<parallel>, #tpu.dimension_semantics<arbitrary>], iteration_bounds = array<i64: 2, 2>, scalar_prefetch = 0 : i64, scratch_operands = 4 : i64, tpu.core_type = #tpu.core_type<tc>, window_params = [{transform_indices = @transform_0, window_bounds = array<i64: 64, 128>}, {pipeline_mode = #tpu.pipeline_mode<synchronous>, transform_indices = @transform_1, window_bounds = array<i64: 128, 128>}, {pipeline_mode = #tpu.pipeline_mode<synchronous>, transform_indices = @transform_2, window_bounds = array<i64: 1, 128>}, {pipeline_mode = #tpu.pipeline_mode<synchronous>, transform_indices = @transform_3, window_bounds = array<i64: 1, 128>}, {pipeline_mode = #tpu.pipeline_mode<synchronous>, transform_indices = @transform_4, window_bounds = array<i64: 1, 128>}, {transform_indices = @transform_5, window_bounds = array<i64: 128, 256>}, {transform_indices = @transform_6, window_bounds = array<i64: 1, 256>}, {transform_indices = @transform_7, window_bounds = array<i64: 64, 1>}, {transform_indices = @transform_8, window_bounds = array<i64: 64, 256>}, {transform_indices = @transform_9, window_bounds = array<i64: 64, 1>}]} {
    %c0_i32 = arith.constant 0 : i32
    %0 = arith.cmpi eq, %arg1, %c0_i32 : i32
    %1 = arith.extui %0 : i1 to i32
    %c0_i32_0 = arith.constant 0 : i32
    %2 = arith.cmpi ne, %1, %c0_i32_0 : i32
    scf.if %2 {
      %c0_26 = arith.constant 0 : index
      %c0_27 = arith.constant 0 : index
      %53 = vector.load %arg2[%c0_26, %c0_27] : memref<64x128xf32, #tpu.memory_space<vmem>>, vector<64x128xf32>
      %54 = arith.truncf %53 : vector<64x128xf32> to vector<64x128xbf16>
      %c0_28 = arith.constant 0 : index
      %c0_29 = arith.constant 0 : index
      %55 = vector.load %arg3[%c0_28, %c0_29] : memref<128x128xbf16, #tpu.memory_space<vmem>>, vector<128x128xbf16>
      %cst_30 = arith.constant dense<0.000000e+00> : vector<64x128xf32>
      %56 = tpu.matmul %54, %55, %cst_30 {dimension_numbers = #tpu.dot_dimension_numbers<[1], [0], [0], [1], [0, 0, 1, 1], [], []>} : vector<64x128xbf16>, vector<128x128xbf16>, vector<64x128xf32> -> vector<64x128xf32>
      %c0_31 = arith.constant 0 : index
      %c0_32 = arith.constant 0 : index
      %57 = vector.load %arg4[%c0_31, %c0_32] : memref<1x128xf32, #tpu.memory_space<vmem>>, vector<1x128xf32>
      %58 = vector.broadcast %57 : vector<1x128xf32> to vector<64x128xf32>
      %59 = arith.addf %56, %58 : vector<64x128xf32>
      %cst_33 = arith.constant 5.000000e-01 : f32
      %60 = vector.broadcast %cst_33 : f32 to vector<64x128xf32>
      %61 = arith.mulf %59, %60 : vector<64x128xf32>
      %cst_34 = arith.constant 0.707106769 : f32
      %62 = vector.broadcast %cst_34 : f32 to vector<64x128xf32>
      %63 = arith.mulf %59, %62 : vector<64x128xf32>
      %64 = math.erf %63 : vector<64x128xf32>
      %cst_35 = arith.constant 1.000000e+00 : f32
      %65 = vector.broadcast %cst_35 : f32 to vector<64x128xf32>
      %66 = arith.addf %65, %64 : vector<64x128xf32>
      %67 = arith.mulf %61, %66 : vector<64x128xf32>
      %cst_36 = arith.constant dense<0.000000e+00> : vector<64xf32>
      %68 = vector.multi_reduction <add>, %67, %cst_36 [1] : vector<64x128xf32> to vector<64xf32>
      %69 = vector.shape_cast %68 : vector<64xf32> to vector<64x1xf32>
      %cst_37 = arith.constant 1.280000e+02 : f32
      %70 = vector.broadcast %cst_37 : f32 to vector<64x1xf32>
      %71 = arith.divf %69, %70 : vector<64x1xf32>
      %72 = vector.broadcast %71 : vector<64x1xf32> to vector<64x128xf32>
      %73 = arith.subf %67, %72 : vector<64x128xf32>
      %74 = arith.mulf %73, %73 : vector<64x128xf32>
      %cst_38 = arith.constant dense<0.000000e+00> : vector<64xf32>
      %75 = vector.multi_reduction <add>, %74, %cst_38 [1] : vector<64x128xf32> to vector<64xf32>
      %76 = vector.shape_cast %75 : vector<64xf32> to vector<64x1xf32>
      %cst_39 = arith.constant 1.280000e+02 : f32
      %77 = vector.broadcast %cst_39 : f32 to vector<64x1xf32>
      %78 = arith.divf %76, %77 : vector<64x1xf32>
      %79 = vector.broadcast %71 : vector<64x1xf32> to vector<64x128xf32>
      %80 = arith.subf %67, %79 : vector<64x128xf32>
      %cst_40 = arith.constant 9.99999996E-13 : f32
      %81 = vector.broadcast %cst_40 : f32 to vector<64x1xf32>
      %82 = arith.addf %78, %81 : vector<64x1xf32>
      %83 = math.rsqrt %82 : vector<64x1xf32>
      %84 = vector.broadcast %83 : vector<64x1xf32> to vector<64x128xf32>
      %85 = arith.mulf %80, %84 : vector<64x128xf32>
      %c0_41 = arith.constant 0 : index
      %c0_42 = arith.constant 0 : index
      %86 = vector.load %arg5[%c0_41, %c0_42] : memref<1x128xf32, #tpu.memory_space<vmem>>, vector<1x128xf32>
      %87 = vector.broadcast %86 : vector<1x128xf32> to vector<64x128xf32>
      %88 = arith.mulf %85, %87 : vector<64x128xf32>
      %c0_43 = arith.constant 0 : index
      %c0_44 = arith.constant 0 : index
      %89 = vector.load %arg6[%c0_43, %c0_44] : memref<1x128xf32, #tpu.memory_space<vmem>>, vector<1x128xf32>
      %90 = vector.broadcast %89 : vector<1x128xf32> to vector<64x128xf32>
      %91 = arith.addf %88, %90 : vector<64x128xf32>
      %92 = arith.truncf %91 : vector<64x128xf32> to vector<64x128xbf16>
      %c0_45 = arith.constant 0 : index
      %c0_46 = arith.constant 0 : index
      %93 = vector.load %arg12[%c0_45, %c0_46] : memref<64x128xbf16, #tpu.memory_space<vmem>>, vector<64x128xbf16>
      tpu.vector_store %arg12[%c0_45, %c0_46], %92 {strides = array<i32>} : memref<64x128xbf16, #tpu.memory_space<vmem>>, vector<64x128xbf16>,
      %cst_47 = arith.constant 0xFF800000 : f32
      %94 = vector.broadcast %cst_47 : f32 to vector<64x128xf32>
      %c0_48 = arith.constant 0 : index
      %c0_49 = arith.constant 0 : index
      %95 = vector.load %arg13[%c0_48, %c0_49] : memref<64x128xf32, #tpu.memory_space<vmem>>, vector<64x128xf32>
      tpu.vector_store %arg13[%c0_48, %c0_49], %94 {strides = array<i32>} : memref<64x128xf32, #tpu.memory_space<vmem>>, vector<64x128xf32>,
      %cst_50 = arith.constant 0.000000e+00 : f32
      %96 = vector.broadcast %cst_50 : f32 to vector<64x128xf32>
      %c0_51 = arith.constant 0 : index
      %c0_52 = arith.constant 0 : index
      %97 = vector.load %arg14[%c0_51, %c0_52] : memref<64x128xf32, #tpu.memory_space<vmem>>, vector<64x128xf32>
      tpu.vector_store %arg14[%c0_51, %c0_52], %96 {strides = array<i32>} : memref<64x128xf32, #tpu.memory_space<vmem>>, vector<64x128xf32>,
      %cst_53 = arith.constant 0.000000e+00 : f32
      %98 = vector.broadcast %cst_53 : f32 to vector<64x128xf32>
      %c0_54 = arith.constant 0 : index
      %c0_55 = arith.constant 0 : index
      %99 = vector.load %arg15[%c0_54, %c0_55] : memref<64x128xf32, #tpu.memory_space<vmem>>, vector<64x128xf32>
      tpu.vector_store %arg15[%c0_54, %c0_55], %98 {strides = array<i32>} : memref<64x128xf32, #tpu.memory_space<vmem>>, vector<64x128xf32>,
      %cst_56 = arith.constant 0.000000e+00 : f32
      %100 = vector.broadcast %cst_56 : f32 to vector<64x1xf32>
      %c0_57 = arith.constant 0 : index
      %c0_58 = arith.constant 0 : index
      %101 = vector.load %arg11[%c0_57, %c0_58] : memref<64x1xf32, #tpu.memory_space<vmem>>, vector<64x1xf32>
      tpu.vector_store %arg11[%c0_57, %c0_58], %100 {strides = array<i32>} : memref<64x1xf32, #tpu.memory_space<vmem>>, vector<64x1xf32>,
    } else {
    }
    %c0 = arith.constant 0 : index
    %c0_1 = arith.constant 0 : index
    %3 = vector.load %arg12[%c0, %c0_1] : memref<64x128xbf16, #tpu.memory_space<vmem>>, vector<64x128xbf16>
    %c0_2 = arith.constant 0 : index
    %c0_3 = arith.constant 0 : index
    %4 = vector.load %arg7[%c0_2, %c0_3] : memref<128x256xbf16, #tpu.memory_space<vmem>>, vector<128x256xbf16>
    %cst = arith.constant dense<0.000000e+00> : vector<64x256xf32>
    %5 = tpu.matmul %3, %4, %cst {dimension_numbers = #tpu.dot_dimension_numbers<[1], [0], [0], [1], [0, 0, 1, 1], [], []>} : vector<64x128xbf16>, vector<128x256xbf16>, vector<64x256xf32> -> vector<64x256xf32>
    %c0_4 = arith.constant 0 : index
    %c0_5 = arith.constant 0 : index
    %6 = vector.load %arg8[%c0_4, %c0_5] : memref<1x256xf32, #tpu.memory_space<vmem>>, vector<1x256xf32>
    %7 = vector.broadcast %6 : vector<1x256xf32> to vector<64x256xf32>
    %8 = arith.addf %5, %7 : vector<64x256xf32>
    %c0_6 = arith.constant 0 : index
    %c0_7 = arith.constant 0 : index
    %9 = vector.load %arg10[%c0_6, %c0_7] : memref<64x256xf32, #tpu.memory_space<vmem>>, vector<64x256xf32>
    tpu.vector_store %arg10[%c0_6, %c0_7], %8 {strides = array<i32>} : memref<64x256xf32, #tpu.memory_space<vmem>>, vector<64x256xf32>,
    %10 = vector.extract_strided_slice %8 {offsets = [0, 0], sizes = [64, 128], strides = [1, 1]} : vector<64x256xf32> to vector<64x128xf32>
    %11 = vector.extract_strided_slice %8 {offsets = [0, 128], sizes = [64, 128], strides = [1, 1]} : vector<64x256xf32> to vector<64x128xf32>
    %12 = arith.maximumf %10, %11 : vector<64x128xf32>
    %c0_8 = arith.constant 0 : index
    %c0_9 = arith.constant 0 : index
    %13 = vector.load %arg13[%c0_8, %c0_9] : memref<64x128xf32, #tpu.memory_space<vmem>>, vector<64x128xf32>
    %14 = arith.maximumf %13, %12 : vector<64x128xf32>
    %c0_10 = arith.constant 0 : index
    %c0_11 = arith.constant 0 : index
    %15 = vector.load %arg14[%c0_10, %c0_11] : memref<64x128xf32, #tpu.memory_space<vmem>>, vector<64x128xf32>
    %16 = arith.subf %13, %14 : vector<64x128xf32>
    %17 = math.exp %16 : vector<64x128xf32>
    %18 = arith.mulf %15, %17 : vector<64x128xf32>
    %c0_12 = arith.constant 0 : index
    %c0_13 = arith.constant 0 : index
    %19 = vector.load %arg15[%c0_12, %c0_13] : memref<64x128xf32, #tpu.memory_space<vmem>>, vector<64x128xf32>
    %c0_14 = arith.constant 0 : index
    %c0_15 = arith.constant 0 : index
    %20 = vector.load %arg9[%c0_14, %c0_15] : memref<64x1xi32, #tpu.memory_space<vmem>>, vector<64x1xi32>
    %c256_i32 = arith.constant 256 : i32
    %21 = arith.muli %arg1, %c256_i32 : i32
    %22 = vector.broadcast %21 : i32 to vector<64x1xi32>
    %23 = arith.subi %20, %22 : vector<64x1xi32>
    %24 = tpu.iota {dimensions = array<i32: 1>} : vector<64x128xi32>
    %25 = vector.extract_strided_slice %8 {offsets = [0, 0], sizes = [64, 128], strides = [1, 1]} : vector<64x256xf32> to vector<64x128xf32>
    %26 = arith.subf %25, %14 : vector<64x128xf32>
    %27 = math.exp %26 : vector<64x128xf32>
    %28 = arith.addf %18, %27 : vector<64x128xf32>
    %c0_i32_16 = arith.constant 0 : i32
    %29 = vector.broadcast %c0_i32_16 : i32 to vector<64x1xi32>
    %30 = arith.subi %23, %29 : vector<64x1xi32>
    %31 = vector.broadcast %30 : vector<64x1xi32> to vector<64x128xi32>
    %32 = arith.cmpi eq, %24, %31 : vector<64x128xi32>
    %cst_17 = arith.constant 0.000000e+00 : f32
    %33 = vector.broadcast %cst_17 : f32 to vector<64x128xf32>
    %34 = arith.select %32, %25, %33 : vector<64x128xi1>, vector<64x128xf32>
    %35 = arith.addf %19, %34 : vector<64x128xf32>
    %36 = vector.extract_strided_slice %8 {offsets = [0, 128], sizes = [64, 128], strides = [1, 1]} : vector<64x256xf32> to vector<64x128xf32>
    %37 = arith.subf %36, %14 : vector<64x128xf32>
    %38 = math.exp %37 : vector<64x128xf32>
    %39 = arith.addf %28, %38 : vector<64x128xf32>
    %c128_i32 = arith.constant 128 : i32
    %40 = vector.broadcast %c128_i32 : i32 to vector<64x1xi32>
    %41 = arith.subi %23, %40 : vector<64x1xi32>
    %42 = vector.broadcast %41 : vector<64x1xi32> to vector<64x128xi32>
    %43 = arith.cmpi eq, %24, %42 : vector<64x128xi32>
    %cst_18 = arith.constant 0.000000e+00 : f32
    %44 = vector.broadcast %cst_18 : f32 to vector<64x128xf32>
    %45 = arith.select %43, %36, %44 : vector<64x128xi1>, vector<64x128xf32>
    %46 = arith.addf %35, %45 : vector<64x128xf32>
    %c0_19 = arith.constant 0 : index
    %c0_20 = arith.constant 0 : index
    %47 = vector.load %arg13[%c0_19, %c0_20] : memref<64x128xf32, #tpu.memory_space<vmem>>, vector<64x128xf32>
    tpu.vector_store %arg13[%c0_19, %c0_20], %14 {strides = array<i32>} : memref<64x128xf32, #tpu.memory_space<vmem>>, vector<64x128xf32>,
    %c0_21 = arith.constant 0 : index
    %c0_22 = arith.constant 0 : index
    %48 = vector.load %arg14[%c0_21, %c0_22] : memref<64x128xf32, #tpu.memory_space<vmem>>, vector<64x128xf32>
    tpu.vector_store %arg14[%c0_21, %c0_22], %39 {strides = array<i32>} : memref<64x128xf32, #tpu.memory_space<vmem>>, vector<64x128xf32>,
    %c0_23 = arith.constant 0 : index
    %c0_24 = arith.constant 0 : index
    %49 = vector.load %arg15[%c0_23, %c0_24] : memref<64x128xf32, #tpu.memory_space<vmem>>, vector<64x128xf32>
    tpu.vector_store %arg15[%c0_23, %c0_24], %46 {strides = array<i32>} : memref<64x128xf32, #tpu.memory_space<vmem>>, vector<64x128xf32>,
    %c1_i32 = arith.constant 1 : i32
    %50 = arith.cmpi eq, %arg1, %c1_i32 : i32
    %51 = arith.extui %50 : i1 to i32
    %c0_i32_25 = arith.constant 0 : i32
    %52 = arith.cmpi ne, %51, %c0_i32_25 : i32
    scf.if %52 {
      %c0_26 = arith.constant 0 : index
      %c0_27 = arith.constant 0 : index
      %53 = vector.load %arg13[%c0_26, %c0_27] : memref<64x128xf32, #tpu.memory_space<vmem>>, vector<64x128xf32>
      %cst_28 = arith.constant dense<0xFF800000> : vector<64xf32>
      %54 = vector.multi_reduction <maximumf>, %53, %cst_28 [1] : vector<64x128xf32> to vector<64xf32>
      %55 = vector.shape_cast %54 : vector<64xf32> to vector<64x1xf32>
      %c0_29 = arith.constant 0 : index
      %c0_30 = arith.constant 0 : index
      %56 = vector.load %arg14[%c0_29, %c0_30] : memref<64x128xf32, #tpu.memory_space<vmem>>, vector<64x128xf32>
      %57 = vector.broadcast %55 : vector<64x1xf32> to vector<64x128xf32>
      %58 = arith.subf %53, %57 : vector<64x128xf32>
      %59 = math.exp %58 : vector<64x128xf32>
      %60 = arith.mulf %56, %59 : vector<64x128xf32>
      %cst_31 = arith.constant dense<0.000000e+00> : vector<64xf32>
      %61 = vector.multi_reduction <add>, %60, %cst_31 [1] : vector<64x128xf32> to vector<64xf32>
      %62 = vector.shape_cast %61 : vector<64xf32> to vector<64x1xf32>
      %c0_32 = arith.constant 0 : index
      %c0_33 = arith.constant 0 : index
      %63 = vector.load %arg15[%c0_32, %c0_33] : memref<64x128xf32, #tpu.memory_space<vmem>>, vector<64x128xf32>
      %cst_34 = arith.constant dense<0.000000e+00> : vector<64xf32>
      %64 = vector.multi_reduction <add>, %63, %cst_34 [1] : vector<64x128xf32> to vector<64xf32>
      %65 = vector.shape_cast %64 : vector<64xf32> to vector<64x1xf32>
      %c-100_i32 = arith.constant -100 : i32
      %66 = vector.broadcast %c-100_i32 : i32 to vector<64x1xi32>
      %67 = arith.cmpi ne, %20, %66 : vector<64x1xi32>
      %68 = arith.extui %67 : vector<64x1xi1> to vector<64x1xi32>
      %69 = arith.sitofp %68 : vector<64x1xi32> to vector<64x1xf32>
      %70 = math.log %62 : vector<64x1xf32>
      %71 = arith.addf %55, %70 : vector<64x1xf32>
      %72 = arith.subf %71, %65 : vector<64x1xf32>
      %73 = arith.mulf %72, %69 : vector<64x1xf32>
      %c0_35 = arith.constant 0 : index
      %c0_36 = arith.constant 0 : index
      %74 = vector.load %arg11[%c0_35, %c0_36] : memref<64x1xf32, #tpu.memory_space<vmem>>, vector<64x1xf32>
      tpu.vector_store %arg11[%c0_35, %c0_36], %73 {strides = array<i32>} : memref<64x1xf32, #tpu.memory_space<vmem>>, vector<64x1xf32>,
    } else {
    }
    return
  }
  func.func @transform_0(%arg0: i32, %arg1: i32) -> (i32, i32) {
    %c0_i32 = arith.constant 0 : i32
    %c0_i32_0 = arith.constant 0 : i32
    return %arg0, %c0_i32 : i32, i32
  }
  func.func @transform_1(%arg0: i32, %arg1: i32) -> (i32, i32) {
    %c0_i32 = arith.constant 0 : i32
    %c0_i32_0 = arith.constant 0 : i32
    %c0_i32_1 = arith.constant 0 : i32
    return %c0_i32, %c0_i32_0 : i32, i32
  }
  func.func @transform_2(%arg0: i32, %arg1: i32) -> (i32, i32) {
    %c0_i32 = arith.constant 0 : i32
    %c0_i32_0 = arith.constant 0 : i32
    %c0_i32_1 = arith.constant 0 : i32
    return %c0_i32, %c0_i32_0 : i32, i32
  }
  func.func @transform_3(%arg0: i32, %arg1: i32) -> (i32, i32) {
    %c0_i32 = arith.constant 0 : i32
    %c0_i32_0 = arith.constant 0 : i32
    %c0_i32_1 = arith.constant 0 : i32
    return %c0_i32, %c0_i32_0 : i32, i32
  }
  func.func @transform_4(%arg0: i32, %arg1: i32) -> (i32, i32) {
    %c0_i32 = arith.constant 0 : i32
    %c0_i32_0 = arith.constant 0 : i32
    %c0_i32_1 = arith.constant 0 : i32
    return %c0_i32, %c0_i32_0 : i32, i32
  }
  func.func @transform_5(%arg0: i32, %arg1: i32) -> (i32, i32) {
    %c0_i32 = arith.constant 0 : i32
    %c0_i32_0 = arith.constant 0 : i32
    return %c0_i32, %arg1 : i32, i32
  }
  func.func @transform_6(%arg0: i32, %arg1: i32) -> (i32, i32) {
    %c0_i32 = arith.constant 0 : i32
    %c0_i32_0 = arith.constant 0 : i32
    return %c0_i32, %arg1 : i32, i32
  }
  func.func @transform_7(%arg0: i32, %arg1: i32) -> (i32, i32) {
    %c0_i32 = arith.constant 0 : i32
    %c0_i32_0 = arith.constant 0 : i32
    return %arg0, %c0_i32 : i32, i32
  }
  func.func @transform_8(%arg0: i32, %arg1: i32) -> (i32, i32) {
    %c0_i32 = arith.constant 0 : i32
    return %arg0, %arg1 : i32, i32
  }
  func.func @transform_9(%arg0: i32, %arg1: i32) -> (i32, i32) {
    %c0_i32 = arith.constant 0 : i32
    %c0_i32_0 = arith.constant 0 : i32
    return %arg0, %c0_i32 : i32, i32
  }
}

</mosaic_0001>

<llo_original>
// kernel: tpu_custom_call.1
$region0: #{tpu_custom_call.1}
  #allocation0 [shape = 'u32[]', space=smem, size = 0x4, offset = 0x4, fixed_abs, tag = 'smem constant byte address 0x4 - core index']
  #allocation1 [shape = 'u32[72,128]{1,0:T(1,128)}', space=vmem, size = 0x9000, scoped, tag = 'internal scratch']
  #allocation2 [shape = 'bf16[64,128]{1,0:T(8,128)(2,1)}', space=vmem, size = 0x4000, scoped, tag = 'scratch operand']
  #allocation3 [shape = 'f32[64,128]{1,0:T(8,128)}', space=vmem, size = 0x8000, scoped, tag = 'scratch operand']
  #allocation4 [shape = 'f32[64,128]{1,0:T(8,128)}', space=vmem, size = 0x8000, scoped, tag = 'scratch operand']
  #allocation5 [shape = 'f32[64,128]{1,0:T(8,128)}', space=vmem, size = 0x8000, scoped, tag = 'scratch operand']
  %s0 = inlined_call_operand.vmem [shape: f32[128,128], index: 0, kind: input, shape index: {}]
  %s1 = inlined_call_operand.hbm [shape: bf16[128,128], index: 1, kind: input, shape index: {}]
  %s2 = inlined_call_operand.vmem [shape: f32[1,128], index: 2, kind: input, shape index: {}]
  %s3 = inlined_call_operand.hbm [shape: f32[1,128], index: 3, kind: input, shape index: {}]
  %s4 = inlined_call_operand.hbm [shape: f32[1,128], index: 4, kind: input, shape index: {}]
  %s5 = inlined_call_operand.hbm [shape: bf16[128,512], index: 5, kind: input, shape index: {}]
  %s6 = inlined_call_operand.vmem [shape: f32[1,512], index: 6, kind: input, shape index: {}]
  %s7 = inlined_call_operand.vmem [shape: s32[128,1], index: 7, kind: input, shape index: {}]
  %s8 = inlined_call_operand.hbm [shape: f32[128,512], index: 8, kind: output, shape index: {0}]
  %s9 = inlined_call_operand.vmem [shape: f32[128,1], index: 9, kind: output, shape index: {1}]
  %10 = xla_tuple %s8, %s9
  %s11 = sld [smem:[#allocation0]]
  $region97: #{tpu_custom_call.1} parent=0
    _
  %s13 = ssub.s32 1, %s11
  %s14 = scalar_select 0, %s13, %s11
  $region1: #{tpu_custom_call.1} parent=0
    #allocation6 [shape = 'u8[32768]{0}', space=vmem, size = 0x8000, scoped, tag = 'input window, operand 1, single buffered']
    #allocation7 [shape = 's32[2]{0}', space=sflag, size = 0x8, scoped, tag = 'scoped memory for tpu_custom_call.1']
    #allocation8 [shape = 's32[2]{0}', space=sflag, size = 0x8, scoped, tag = 'scoped memory for tpu_custom_call.1']
    #allocation9 [shape = 'u8[512]{0}', space=vmem, size = 0x400, scoped, tag = 'input window, operand 3, single buffered']
    #allocation10 [shape = 's32[1]{0}', space=sflag, size = 0x4, scoped, tag = 'scoped memory for tpu_custom_call.1']
    #allocation11 [shape = 'u8[512]{0}', space=vmem, size = 0x400, scoped, tag = 'input window, operand 4, single buffered']
    #allocation12 [shape = 'u8[131072]{0}', space=vmem, size = 0x20000, scoped, tag = 'input window, operand 5']
    #allocation13 [shape = 's32[2]{0}', space=sflag, size = 0x8, scoped, tag = 'scoped memory for tpu_custom_call.1']
    #allocation14 [shape = 'u8[131072]{0}', space=vmem, size = 0x20000, scoped, tag = 'output window, operand 0']
    %15 = vsyncpa [#allocation7], 0
    %16 = vsyncpa [#allocation10], 0
    %17 = vsyncpa [#allocation13], 0
    %s18 = scalar_lea.sflag [#allocation13], 1
    %19 = vsyncpa %s18, 0
    %20 = vsyncpa [#allocation8], 0
    %s21 = scalar_lea.sflag [#allocation8], 1
    %22 = vsyncpa %s21, 0
    loop: start=0, step=1, limit=6
    $region2: #{tpu_custom_call.1} parent=1 // loop_pre_header
      _
    $region3: #{tpu_custom_call.1} parent=1 // loop_header
      %s24 = sphi 0, %s28
      %p25 = scmp.ge.s32.totalorder %s24, 6
      %s31 = sphi 0, %s43
      %s32 = sphi 0, %s39
      %s33 = sphi 0, %s31
      %s34 = sphi 0, %s32
      %s35 = sphi 0, %s33
      %s36 = sphi 0, %s34
      %s46 = sphi 0, %s48
      %s49 = sphi 0, %s46
      %s50 = sphi 0, %s49
      %s66 = sphi 0, %s50
      %s70 = sphi 0, %s70
      %s72 = sphi 0, %s70
      %s73 = sphi 0, %s72
      %s87 = sphi 0, %s73
      %s91 = sphi 0, %s91
      %s93 = sphi 0, %s91
      %s94 = sphi 0, %s93
      %s108 = sphi 0, %s94
      %s112 = sphi 0, %s112
      %s114 = sphi 0, %s112
      %s115 = sphi 0, %s114
      %s129 = sphi 0, %s115
      %s133 = sphi 0, %s133
      %s135 = sphi 0, %s133
      %s136 = sphi 0, %s135
      %s150 = sphi 0, %s136
      %s156 = sphi 0, %s158
      %s159 = sphi 0, %s156
      %s160 = sphi 0, %s159
      %s176 = sphi 0, %s160
      %s182 = sphi 0, %s184
      %s185 = sphi 0, %s182
      %s186 = sphi 0, %s185
      %s202 = sphi 0, %s186
      %s208 = sphi 0, %s210
      %s211 = sphi 0, %s208
      %s212 = sphi 0, %s211
      %s228 = sphi 0, %s212
      %s236 = sphi 0, %s238
      %s239 = sphi 0, %s236
      %s240 = sphi 0, %s239
      %s256 = sphi 0, %s240
      %s262 = sphi 0, %s264
      %s265 = sphi 0, %s262
      %s266 = sphi 0, %s265
      %s282 = sphi 0, %s266
    $region4: #{tpu_custom_call.1} parent=1 // loop_header_branch
      %27 = sbr.rel (%p25) target = $region8
    $region5: #{tpu_custom_call.1} parent=1 // loop_body
      %s29 = ssub.s32 %s24, 1
      %s30 = ssub.s32 %s24, 2
      %s37 = sadd.s32 1, %s32
      %p38 = scmp.ge.s32.totalorder %s37, 2
      %s39 = scalar_select %p38, 0, %s37
      %s40 = sadd.s32 1, %s31
      %s41 = scalar_select %p38, %s40, %s31
      %p42 = scmp.ge.s32.totalorder %s41, 2
      %s43 = scalar_select %p42, 0, %s41
      %s44 = ssub.s32 %s31, %s43
      %p45 = scmp.eq.s32.totalorder %s44, 0
      %s47 = sadd.s32 %s46, 1
      %s48 = scalar_select %p45, %s46, %s47
      %p51 = pneg %p45
      %p52 = scmp.eq.s32.totalorder %s24, 3
      %p53 = por %p51, %p52
      %p54 = scmp.ne.s32.totalorder %s46, %s49
      %p55 = scmp.eq.s32.totalorder %s24, 0
      %p56 = por %p54, %p55
      %p57 = scmp.ne.s32.totalorder %s46, %s49
      %p58 = scmp.eq.s32.totalorder %s29, 3
      %p59 = por %p57, %p58
      %p60 = scmp.ne.s32.totalorder %s49, %s50
      %p61 = scmp.eq.s32.totalorder %s29, 0
      %p62 = por %p60, %p61
      %p63 = scmp.ne.s32.totalorder %s49, %s50
      %p64 = scmp.eq.s32.totalorder %s30, 3
      %p65 = por %p63, %p64
      %p67 = scmp.ne.s32.totalorder %s50, %s66
      %p68 = scmp.eq.s32.totalorder %s30, 0
      %p69 = por %p67, %p68
      %s71 = sadd.s32 %s70, 1
      %p74 = scmp.eq.s32.totalorder %s24, 3
      %p75 = scmp.ne.s32.totalorder %s70, %s72
      %p76 = scmp.eq.s32.totalorder %s24, 0
      %p77 = por %p75, %p76
      %p78 = scmp.ne.s32.totalorder %s70, %s72
      %p79 = scmp.eq.s32.totalorder %s29, 3
      %p80 = por %p78, %p79
      %p81 = scmp.ne.s32.totalorder %s72, %s73
      %p82 = scmp.eq.s32.totalorder %s29, 0
      %p83 = por %p81, %p82
      %p84 = scmp.ne.s32.totalorder %s72, %s73
      %p85 = scmp.eq.s32.totalorder %s30, 3
      %p86 = por %p84, %p85
      %p88 = scmp.ne.s32.totalorder %s73, %s87
      %p89 = scmp.eq.s32.totalorder %s30, 0
      %p90 = por %p88, %p89
      %s92 = sadd.s32 %s91, 1
      %p95 = scmp.eq.s32.totalorder %s24, 3
      %p96 = scmp.ne.s32.totalorder %s91, %s93
      %p97 = scmp.eq.s32.totalorder %s24, 0
      %p98 = por %p96, %p97
      %p99 = scmp.ne.s32.totalorder %s91, %s93
      %p100 = scmp.eq.s32.totalorder %s29, 3
      %p101 = por %p99, %p100
      %p102 = scmp.ne.s32.totalorder %s93, %s94
      %p103 = scmp.eq.s32.totalorder %s29, 0
      %p104 = por %p102, %p103
      %p105 = scmp.ne.s32.totalorder %s93, %s94
      %p106 = scmp.eq.s32.totalorder %s30, 3
      %p107 = por %p105, %p106
      %p109 = scmp.ne.s32.totalorder %s94, %s108
      %p110 = scmp.eq.s32.totalorder %s30, 0
      %p111 = por %p109, %p110
      %s113 = sadd.s32 %s112, 1
      %p116 = scmp.eq.s32.totalorder %s24, 3
      %p117 = scmp.ne.s32.totalorder %s112, %s114
      %p118 = scmp.eq.s32.totalorder %s24, 0
      %p119 = por %p117, %p118
      %p120 = scmp.ne.s32.totalorder %s112, %s114
      %p121 = scmp.eq.s32.totalorder %s29, 3
      %p122 = por %p120, %p121
      %p123 = scmp.ne.s32.totalorder %s114, %s115
      %p124 = scmp.eq.s32.totalorder %s29, 0
      %p125 = por %p123, %p124
      %p126 = scmp.ne.s32.totalorder %s114, %s115
      %p127 = scmp.eq.s32.totalorder %s30, 3
      %p128 = por %p126, %p127
      %p130 = scmp.ne.s32.totalorder %s115, %s129
      %p131 = scmp.eq.s32.totalorder %s30, 0
      %p132 = por %p130, %p131
      %s134 = sadd.s32 %s133, 1
      %p137 = scmp.eq.s32.totalorder %s24, 3
      %p138 = scmp.ne.s32.totalorder %s133, %s135
      %p139 = scmp.eq.s32.totalorder %s24, 0
      %p140 = por %p138, %p139
      %p141 = scmp.ne.s32.totalorder %s133, %s135
      %p142 = scmp.eq.s32.totalorder %s29, 3
      %p143 = por %p141, %p142
      %p144 = scmp.ne.s32.totalorder %s135, %s136
      %p145 = scmp.eq.s32.totalorder %s29, 0
      %p146 = por %p144, %p145
      %p147 = scmp.ne.s32.totalorder %s135, %s136
      %p148 = scmp.eq.s32.totalorder %s30, 3
      %p149 = por %p147, %p148
      %p151 = scmp.ne.s32.totalorder %s136, %s150
      %p152 = scmp.eq.s32.totalorder %s30, 0
      %p153 = por %p151, %p152
      %s154 = ssub.s32 %s32, %s39
      %p155 = scmp.eq.s32.totalorder %s154, 0
      %s157 = sadd.s32 %s156, 1
      %s158 = scalar_select %p155, %s156, %s157
      %p161 = pneg %p155
      %p162 = scmp.eq.s32.totalorder %s24, 3
      %p163 = por %p161, %p162
      %p164 = scmp.ne.s32.totalorder %s156, %s159
      %p165 = scmp.eq.s32.totalorder %s24, 0
      %p166 = por %p164, %p165
      %p167 = scmp.ne.s32.totalorder %s156, %s159
      %p168 = scmp.eq.s32.totalorder %s29, 3
      %p169 = por %p167, %p168
      %p170 = scmp.ne.s32.totalorder %s159, %s160
      %p171 = scmp.eq.s32.totalorder %s29, 0
      %p172 = por %p170, %p171
      %p173 = scmp.ne.s32.totalorder %s159, %s160
      %p174 = scmp.eq.s32.totalorder %s30, 3
      %p175 = por %p173, %p174
      %p177 = scmp.ne.s32.totalorder %s160, %s176
      %p178 = scmp.eq.s32.totalorder %s30, 0
      %p179 = por %p177, %p178
      %s180 = ssub.s32 %s32, %s39
      %p181 = scmp.eq.s32.totalorder %s180, 0
      %s183 = sadd.s32 %s182, 1
      %s184 = scalar_select %p181, %s182, %s183
      %p187 = pneg %p181
      %p188 = scmp.eq.s32.totalorder %s24, 3
      %p189 = por %p187, %p188
      %p190 = scmp.ne.s32.totalorder %s182, %s185
      %p191 = scmp.eq.s32.totalorder %s24, 0
      %p192 = por %p190, %p191
      %p193 = scmp.ne.s32.totalorder %s182, %s185
      %p194 = scmp.eq.s32.totalorder %s29, 3
      %p195 = por %p193, %p194
      %p196 = scmp.ne.s32.totalorder %s185, %s186
      %p197 = scmp.eq.s32.totalorder %s29, 0
      %p198 = por %p196, %p197
      %p199 = scmp.ne.s32.totalorder %s185, %s186
      %p200 = scmp.eq.s32.totalorder %s30, 3
      %p201 = por %p199, %p200
      %p203 = scmp.ne.s32.totalorder %s186, %s202
      %p204 = scmp.eq.s32.totalorder %s30, 0
      %p205 = por %p203, %p204
      %s206 = ssub.s32 %s31, %s43
      %p207 = scmp.eq.s32.totalorder %s206, 0
      %s209 = sadd.s32 %s208, 1
      %s210 = scalar_select %p207, %s208, %s209
      %p213 = pneg %p207
      %p214 = scmp.eq.s32.totalorder %s24, 3
      %p215 = por %p213, %p214
      %p216 = scmp.ne.s32.totalorder %s208, %s211
      %p217 = scmp.eq.s32.totalorder %s24, 0
      %p218 = por %p216, %p217
      %p219 = scmp.ne.s32.totalorder %s208, %s211
      %p220 = scmp.eq.s32.totalorder %s29, 3
      %p221 = por %p219, %p220
      %p222 = scmp.ne.s32.totalorder %s211, %s212
      %p223 = scmp.eq.s32.totalorder %s29, 0
      %p224 = por %p222, %p223
      %p225 = scmp.ne.s32.totalorder %s211, %s212
      %p226 = scmp.eq.s32.totalorder %s30, 3
      %p227 = por %p225, %p226
      %p229 = scmp.ne.s32.totalorder %s212, %s228
      %p230 = scmp.eq.s32.totalorder %s30, 0
      %p231 = por %p229, %p230
      %s232 = ssub.s32 %s31, %s43
      %s233 = ssub.s32 %s32, %s39
      %s234 = sor.u32 %s232, %s233
      %p235 = scmp.eq.s32.totalorder %s234, 0
      %s237 = sadd.s32 %s236, 1
      %s238 = scalar_select %p235, %s236, %s237
      %p241 = pneg %p235
      %p242 = scmp.eq.s32.totalorder %s24, 3
      %p243 = por %p241, %p242
      %p244 = scmp.ne.s32.totalorder %s236, %s239
      %p245 = scmp.eq.s32.totalorder %s24, 0
      %p246 = por %p244, %p245
      %p247 = scmp.ne.s32.totalorder %s236, %s239
      %p248 = scmp.eq.s32.totalorder %s29, 3
      %p249 = por %p247, %p248
      %p250 = scmp.ne.s32.totalorder %s239, %s240
      %p251 = scmp.eq.s32.totalorder %s29, 0
      %p252 = por %p250, %p251
      %p253 = scmp.ne.s32.totalorder %s239, %s240
      %p254 = scmp.eq.s32.totalorder %s30, 3
      %p255 = por %p253, %p254
      %p257 = scmp.ne.s32.totalorder %s240, %s256
      %p258 = scmp.eq.s32.totalorder %s30, 0
      %p259 = por %p257, %p258
      %s260 = ssub.s32 %s31, %s43
      %p261 = scmp.eq.s32.totalorder %s260, 0
      %s263 = sadd.s32 %s262, 1
      %s264 = scalar_select %p261, %s262, %s263
      %p267 = pneg %p261
      %p268 = scmp.eq.s32.totalorder %s24, 3
      %p269 = por %p267, %p268
      %p270 = scmp.ne.s32.totalorder %s262, %s265
      %p271 = scmp.eq.s32.totalorder %s24, 0
      %p272 = por %p270, %p271
      %p273 = scmp.ne.s32.totalorder %s262, %s265
      %p274 = scmp.eq.s32.totalorder %s29, 3
      %p275 = por %p273, %p274
      %p276 = scmp.ne.s32.totalorder %s265, %s266
      %p277 = scmp.eq.s32.totalorder %s29, 0
      %p278 = por %p276, %p277
      %p279 = scmp.ne.s32.totalorder %s265, %s266
      %p280 = scmp.eq.s32.totalorder %s30, 3
      %p281 = por %p279, %p280
      %p283 = scmp.ne.s32.totalorder %s266, %s282
      %p284 = scmp.eq.s32.totalorder %s30, 0
      %p285 = por %p283, %p284
      %p286 = scmp.le.s32.totalorder 1, %s24
      %p287 = scmp.lt.s32.totalorder %s24, 5
      %p288 = pnand %p286, %p287
      %p289 = pneg %p288
      // Predicated region
      $region9: #{tpu_custom_call.1} parent=5 // pred_check
        _
      $region10: #{tpu_custom_call.1} parent=5 // pred_check_branch
        %291 = sbr.rel (%p288) target = $region12
      $region11: #{tpu_custom_call.1} parent=5 // pred_region
        %s292 = ssub.s32 %s24, 1
        // Predicated region
        $region13: #{tpu_custom_call.1} parent=11 // pred_check
          %p293 = pneg %p83
        $region14: #{tpu_custom_call.1} parent=11 // pred_check_branch
          %295 = sbr.rel (%p293) target = $region16
        $region15: #{tpu_custom_call.1} parent=11 // pred_region
          %297 = vsyncadd [#allocation7], 0
          %s298 = sshll.u32 %s1, 4
          %s299 = int_to_ptr.hbm [resolvable:$true] %s298
          %s300 = sshll.u32 [#allocation6], 4
          %s301 = int_to_ptr.vmem [resolvable:$true] %s300
          %306 = dma.hbm_to_vmem [thread:$0]  %s299, 1024, %s301, [#allocation7], 64, 64, 4
        $region16: #{tpu_custom_call.1} parent=11 // pred_fallthru
          _
        // Predicated region
        $region17: #{tpu_custom_call.1} parent=11 // pred_check
          %p307 = pneg %p104
        $region18: #{tpu_custom_call.1} parent=11 // pred_check_branch
          %309 = sbr.rel (%p307) target = $region20
        $region19: #{tpu_custom_call.1} parent=11 // pred_region
          _
        $region20: #{tpu_custom_call.1} parent=11 // pred_fallthru
          _
        // Predicated region
        $region21: #{tpu_custom_call.1} parent=11 // pred_check
          %p310 = pneg %p125
        $region22: #{tpu_custom_call.1} parent=11 // pred_check_branch
          %312 = sbr.rel (%p310) target = $region24
        $region23: #{tpu_custom_call.1} parent=11 // pred_region
          %314 = vsyncadd [#allocation10], 0
          %s316 = sshll.u32 %s3, 4
          %s317 = int_to_ptr.hbm [resolvable:$true] %s316
          %s318 = sshll.u32 [#allocation9], 4
          %s319 = int_to_ptr.vmem [resolvable:$true] %s318
          %321 = dma.hbm_to_vmem [thread:$0]  %s317, 16, %s319, [#allocation10]
        $region24: #{tpu_custom_call.1} parent=11 // pred_fallthru
          _
        // Predicated region
        $region25: #{tpu_custom_call.1} parent=11 // pred_check
          %p322 = pneg %p146
        $region26: #{tpu_custom_call.1} parent=11 // pred_check_branch
          %324 = sbr.rel (%p322) target = $region28
        $region27: #{tpu_custom_call.1} parent=11 // pred_region
          %326 = vsyncadd [#allocation10], 0
          %s328 = sshll.u32 %s4, 4
          %s329 = int_to_ptr.hbm [resolvable:$true] %s328
          %s330 = sshll.u32 [#allocation11], 4
          %s331 = int_to_ptr.vmem [resolvable:$true] %s330
          %333 = dma.hbm_to_vmem [thread:$0]  %s329, 16, %s331, [#allocation10]
        $region28: #{tpu_custom_call.1} parent=11 // pred_fallthru
          _
      $region12: #{tpu_custom_call.1} parent=5 // pred_fallthru
        _
      %p334 = scmp.lt.s32.totalorder %s24, 4
      // Predicated region
      $region29: #{tpu_custom_call.1} parent=5 // pred_check
        %p335 = pneg %p334
      $region30: #{tpu_custom_call.1} parent=5 // pred_check_branch
        %337 = sbr.rel (%p335) target = $region32
      $region31: #{tpu_custom_call.1} parent=5 // pred_region
        // Predicated region
        $region33: #{tpu_custom_call.1} parent=31 // pred_check
          %p338 = pneg %p56
        $region34: #{tpu_custom_call.1} parent=31 // pred_check_branch
          %340 = sbr.rel (%p338) target = $region36
        $region35: #{tpu_custom_call.1} parent=31 // pred_region
          %s341 = smul.u32 8, %s31
          %p342 = scmp.lt.s32.totalorder %s341, 15
          %s343 = scalar_select %p342, %s341, 15
          %s344 = smul.addr %s343, 8
          %s345 = scalar_lea.vmem %s0, %s344
          %s346 = smul.u32 8, %s31
        $region36: #{tpu_custom_call.1} parent=31 // pred_fallthru
          _
        // Predicated region
        $region37: #{tpu_custom_call.1} parent=31 // pred_check
          %p347 = pneg %p166
        $region38: #{tpu_custom_call.1} parent=31 // pred_check_branch
          %349 = sbr.rel (%p347) target = $region40
        $region39: #{tpu_custom_call.1} parent=31 // pred_region
          %s350 = sand.u32 %s156, 1
          %s351 = scalar_lea.sflag [#allocation13], %s350
          %s352 = sand.u32 %s156, 1
          %s353 = smul.addr %s352, 128
          %s354 = scalar_lea.vmem [#allocation12], %s353
          %s355 = smul.u32 2, %s32
          %357 = vsyncadd %s351, 0
          %s358 = smul.addr %s355, 4
          %s359 = scalar_lea.hbm %s5, %s358
          %s360 = sshll.u32 %s359, 4
          %s361 = int_to_ptr.hbm [resolvable:$true] %s360
          %s362 = sshll.u32 %s354, 4
          %s363 = int_to_ptr.vmem [resolvable:$true] %s362
          %368 = dma.hbm_to_vmem [thread:$0]  %s361, 2048, %s363, %s351, 256, 128, 8
        $region40: #{tpu_custom_call.1} parent=31 // pred_fallthru
          _
        // Predicated region
        $region41: #{tpu_custom_call.1} parent=31 // pred_check
          %p369 = pneg %p192
        $region42: #{tpu_custom_call.1} parent=31 // pred_check_branch
          %371 = sbr.rel (%p369) target = $region44
        $region43: #{tpu_custom_call.1} parent=31 // pred_region
          %s372 = smul.u32 2, %s32
          %p373 = scmp.lt.s32.totalorder %s372, 3
          %s374 = scalar_select %p373, %s372, 3
          %s375 = scalar_lea.vmem %s6, %s374
          %s376 = smul.u32 2, %s32
        $region44: #{tpu_custom_call.1} parent=31 // pred_fallthru
          _
        // Predicated region
        $region45: #{tpu_custom_call.1} parent=31 // pred_check
          %p377 = pneg %p218
        $region46: #{tpu_custom_call.1} parent=31 // pred_check_branch
          %379 = sbr.rel (%p377) target = $region48
        $region47: #{tpu_custom_call.1} parent=31 // pred_region
          %s380 = smul.u32 8, %s31
          %p381 = scmp.lt.s32.totalorder %s380, 15
          %s382 = scalar_select %p381, %s380, 15
          %s383 = smul.addr %s382, 8
          %s384 = scalar_lea.vmem %s7, %s383
          %s385 = smul.u32 8, %s31
        $region48: #{tpu_custom_call.1} parent=31 // pred_fallthru
          _
      $region32: #{tpu_custom_call.1} parent=5 // pred_fallthru
        _
      %p386 = scmp.le.s32.totalorder 1, %s24
      %p387 = scmp.lt.s32.totalorder %s24, 5
      %p388 = pnand %p386, %p387
      %p389 = pneg %p388
      // Predicated region
      $region49: #{tpu_custom_call.1} parent=5 // pred_check
        _
      $region50: #{tpu_custom_call.1} parent=5 // pred_check_branch
        %391 = sbr.rel (%p388) target = $region52
      $region51: #{tpu_custom_call.1} parent=5 // pred_region
        %s392 = ssub.s32 %s24, 1
        // Predicated region
        $region53: #{tpu_custom_call.1} parent=51 // pred_check
          %p393 = pneg %p83
        $region54: #{tpu_custom_call.1} parent=51 // pred_check_branch
          %395 = sbr.rel (%p393) target = $region56
        $region55: #{tpu_custom_call.1} parent=51 // pred_region
          %397 = dma.done [#allocation7], 1024
        $region56: #{tpu_custom_call.1} parent=51 // pred_fallthru
          _
        // Predicated region
        $region57: #{tpu_custom_call.1} parent=51 // pred_check
          %p398 = pneg %p125
        $region58: #{tpu_custom_call.1} parent=51 // pred_check_branch
          %400 = sbr.rel (%p398) target = $region60
        $region59: #{tpu_custom_call.1} parent=51 // pred_region
          %402 = dma.done [#allocation10], 16
        $region60: #{tpu_custom_call.1} parent=51 // pred_fallthru
          _
        // Predicated region
        $region61: #{tpu_custom_call.1} parent=51 // pred_check
          %p403 = pneg %p146
        $region62: #{tpu_custom_call.1} parent=51 // pred_check_branch
          %405 = sbr.rel (%p403) target = $region64
        $region63: #{tpu_custom_call.1} parent=51 // pred_region
          %407 = dma.done [#allocation10], 16
        $region64: #{tpu_custom_call.1} parent=51 // pred_fallthru
          _
        %s408 = sand.u32 %s159, 1
        %s409 = scalar_lea.sflag [#allocation13], %s408
        %s410 = sand.u32 %s159, 1
        %s411 = smul.addr %s410, 128
        %s412 = scalar_lea.vmem [#allocation12], %s411
        // Predicated region
        $region65: #{tpu_custom_call.1} parent=51 // pred_check
          %p413 = pneg %p172
        $region66: #{tpu_custom_call.1} parent=51 // pred_check_branch
          %415 = sbr.rel (%p413) target = $region68
        $region67: #{tpu_custom_call.1} parent=51 // pred_region
          %417 = dma.done %s409, 2048
        $region68: #{tpu_custom_call.1} parent=51 // pred_fallthru
          _
        %s418 = smul.u32 8, %s33
        %p419 = scmp.lt.s32.totalorder %s418, 15
        %s420 = scalar_select %p419, %s418, 15
        %s421 = smul.addr %s420, 8
        %s422 = scalar_lea.vmem %s0, %s421
        %p423 = pneg %p62
        %p424 = pneg %p59
        %p425 = pneg %p83
        %p426 = pneg %p80
        %p427 = pneg %p104
        %p428 = pneg %p101
        %p429 = pneg %p125
        %p430 = pneg %p122
        %p431 = pneg %p146
        %p432 = pneg %p143
        %s433 = sand.u32 %s159, 1
        %s434 = scalar_lea.sflag [#allocation13], %s433
        %s435 = sand.u32 %s159, 1
        %s436 = smul.addr %s435, 128
        %s437 = scalar_lea.vmem [#allocation12], %s436
        %p438 = pneg %p172
        %p439 = pneg %p169
        %s440 = smul.u32 2, %s34
        %p441 = scmp.lt.s32.totalorder %s440, 3
        %s442 = scalar_select %p441, %s440, 3
        %s443 = scalar_lea.vmem %s6, %s442
        %p444 = pneg %p198
        %p445 = pneg %p195
        %s446 = smul.u32 8, %s33
        %p447 = scmp.lt.s32.totalorder %s446, 15
        %s448 = scalar_select %p447, %s446, 15
        %s449 = smul.addr %s448, 8
        %s450 = scalar_lea.vmem %s7, %s449
        %p451 = pneg %p224
        %p452 = pneg %p221
        %p453 = pneg %p252
        %p454 = pneg %p249
        %s455 = sand.u32 %s239, 1
        %s456 = scalar_lea.sflag [#allocation8], %s455
        %s457 = sand.u32 %s239, 1
        %s458 = smul.addr %s457, 128
        %s459 = scalar_lea.vmem [#allocation14], %s458
        %p460 = pneg %p278
        %p461 = pneg %p275
        %s462 = smul.u32 8, %s33
        %p463 = scmp.lt.s32.totalorder %s462, 15
        %s464 = scalar_select %p463, %s462, 15
        %s465 = smul.addr %s464, 8
        %s466 = scalar_lea.vmem %s9, %s465
        %s467 = smul.u32 8, %s33
        %p468 = scmp.lt.s32.totalorder %s467, 15
        %s469 = scalar_select %p468, %s467, 15
        %s470 = smul.addr %s469, 8
        %s471 = scalar_lea.vmem %s0, %s470
        %s472 = smul.u32 8, %s33
        %s473 = smul.u32 2, %s34
        %s474 = smul.u32 2, %s34
        %p475 = scmp.lt.s32.totalorder %s474, 3
        %s476 = scalar_select %p475, %s474, 3
        %s477 = scalar_lea.vmem %s6, %s476
        %s478 = smul.u32 2, %s34
        %s479 = smul.u32 8, %s33
        %p480 = scmp.lt.s32.totalorder %s479, 15
        %s481 = scalar_select %p480, %s479, 15
        %s482 = smul.addr %s481, 8
        %s483 = scalar_lea.vmem %s7, %s482
        %s484 = smul.u32 8, %s33
        %s485 = smul.u32 8, %s33
        %s486 = smul.u32 2, %s34
        %s487 = smul.u32 8, %s33
        %p488 = scmp.lt.s32.totalorder %s487, 15
        %s489 = scalar_select %p488, %s487, 15
        %s490 = smul.addr %s489, 8
        %s491 = scalar_lea.vmem %s9, %s490
        %s492 = smul.u32 8, %s33
        %p493 = scmp.eq.s32.totalorder %s34, 0
        // Predicated region
        $region69: #{tpu_custom_call.1} parent=51 // pred_check
          %p494 = pneg %p493
        $region70: #{tpu_custom_call.1} parent=51 // pred_check_branch
          %496 = sbr.rel (%p494) target = $region72
        $region71: #{tpu_custom_call.1} parent=51 // pred_region
          %v497 = vld [vmem:[%s471] sm:$0xff]
          %v498 = vld [vmem:[%s471 + $0x8] sm:$0xff]
          %v499 = vld [vmem:[%s471 + $0x10] sm:$0xff]
          %v500 = vld [vmem:[%s471 + $0x18] sm:$0xff]
          %v501 = vld [vmem:[%s471 + $0x20] sm:$0xff]
          %v502 = vld [vmem:[%s471 + $0x28] sm:$0xff]
          %v503 = vld [vmem:[%s471 + $0x30] sm:$0xff]
          %v504 = vld [vmem:[%s471 + $0x38] sm:$0xff]
          %v505 = vpack.c.bf16 %v498, %v497
          %v506 = vpack.c.bf16 %v500, %v499
          %v507 = vpack.c.bf16 %v502, %v501
          %v508 = vpack.c.bf16 %v504, %v503
          %v509 = vld [vmem:[#allocation6] sm:$0xf]
          %v510 = vld [vmem:[#allocation6 + $0x4] sm:$0xf]
          %v511 = vld [vmem:[#allocation6 + $0x8] sm:$0xf]
          %v512 = vld [vmem:[#allocation6 + $0xc] sm:$0xf]
          %v513 = vld [vmem:[#allocation6 + $0x10] sm:$0xf]
          %v514 = vld [vmem:[#allocation6 + $0x14] sm:$0xf]
          %v515 = vld [vmem:[#allocation6 + $0x18] sm:$0xf]
          %v516 = vld [vmem:[#allocation6 + $0x1c] sm:$0xf]
          %v517 = vld [vmem:[#allocation6 + $0x20] sm:$0xf]
          %v518 = vld [vmem:[#allocation6 + $0x24] sm:$0xf]
          %v519 = vld [vmem:[#allocation6 + $0x28] sm:$0xf]
          %v520 = vld [vmem:[#allocation6 + $0x2c] sm:$0xf]
          %v521 = vld [vmem:[#allocation6 + $0x30] sm:$0xf]
          %v522 = vld [vmem:[#allocation6 + $0x34] sm:$0xf]
          %v523 = vld [vmem:[#allocation6 + $0x38] sm:$0xf]
          %v524 = vld [vmem:[#allocation6 + $0x3c] sm:$0xf]
          %v525 = vld [vmem:[%s2] sm:$0x1]
          %v527 = vperm.slane %v525, 0
          %v545 = vunpack.c.l.b16 %v509
          %v546 = vunpack.c.l.b16 %v510
          %v547 = vunpack.c.l.b16 %v511
          %v548 = vunpack.c.l.b16 %v512
          %v549 = vunpack.c.l.b16 %v513
          %v550 = vunpack.c.l.b16 %v514
          %v551 = vunpack.c.l.b16 %v515
          %v552 = vunpack.c.l.b16 %v516
          %v553 = vunpack.c.l.b16 %v517
          %v554 = vunpack.c.l.b16 %v518
          %v555 = vunpack.c.l.b16 %v519
          %v556 = vunpack.c.l.b16 %v520
          %v557 = vunpack.c.l.b16 %v521
          %v558 = vunpack.c.l.b16 %v522
          %v559 = vunpack.c.l.b16 %v523
          %v560 = vunpack.c.l.b16 %v524
          %v561 = vpack.c.b16 %v546, %v545
          %v562 = vpack.c.b16 %v548, %v547
          %v563 = vpack.c.b16 %v550, %v549
          %v564 = vpack.c.b16 %v552, %v551
          %v565 = vpack.c.b16 %v554, %v553
          %v566 = vpack.c.b16 %v556, %v555
          %v567 = vpack.c.b16 %v558, %v557
          %v568 = vpack.c.b16 %v560, %v559
          %577 = vmatpush.bf16.msra.mxu0 %v568
          %578 = vmatpush.bf16.msra.mxu0 %v567
          %579 = vmatpush.bf16.msra.mxu0 %v566
          %580 = vmatpush.bf16.msra.mxu0 %v565
          %581 = vmatpush.bf16.msra.mxu0 %v564
          %582 = vmatpush.bf16.msra.mxu0 %v563
          %583 = vmatpush.bf16.msra.mxu0 %v562
          %584 = vmatpush.bf16.msra.mxu0 %v561
          %585 = vmatmul.bf16.gmra.mxu0 %v505
          %v586 = vpop.f32.mrf.mxu0
          %v587 = vadd.f32 %v527, %v586
          %v588 = vpop.f32.mrf.mxu0
          %v589 = vadd.f32 %v527, %v588
          %590 = vmatmul.bf16.gmra.mxu0 %v506
          %v591 = vpop.f32.mrf.mxu0
          %v592 = vadd.f32 %v527, %v591
          %v593 = vpop.f32.mrf.mxu0
          %v594 = vadd.f32 %v527, %v593
          %595 = vmatmul.bf16.gmra.mxu0 %v507
          %v596 = vpop.f32.mrf.mxu0
          %v597 = vadd.f32 %v527, %v596
          %v598 = vpop.f32.mrf.mxu0
          %v599 = vadd.f32 %v527, %v598
          %600 = vmatmul.bf16.gmra.mxu0 %v508
          %v601 = vpop.f32.mrf.mxu0
          %v602 = vadd.f32 %v527, %v601
          %v603 = vpop.f32.mrf.mxu0
          %v604 = vadd.f32 %v527, %v603
          %605 = vdwg.mxu0
          %v606 = vmul.f32 %v587, 0.5
          %v607 = vmul.f32 %v589, 0.5
          %v608 = vmul.f32 %v592, 0.5
          %v609 = vmul.f32 %v594, 0.5
          %v610 = vmul.f32 %v597, 0.5
          %v611 = vmul.f32 %v599, 0.5
          %v612 = vmul.f32 %v602, 0.5
          %v613 = vmul.f32 %v604, 0.5
          %v614 = vmul.f32 %v587, 0.70710677
          %v615 = vmul.f32 %v589, 0.70710677
          %v616 = vmul.f32 %v592, 0.70710677
          %v617 = vmul.f32 %v594, 0.70710677
          %v618 = vmul.f32 %v597, 0.70710677
          %v619 = vmul.f32 %v599, 0.70710677
          %v620 = vmul.f32 %v602, 0.70710677
          %v621 = vmul.f32 %v604, 0.70710677
          %v622 = vmul.f32 %v614, %v614
          %v623 = vmin.f32 16.0, %v622
          %v624 = vmul.f32 %v623, 2.1237322e-06
          %v625 = vadd.f32 %v624, 0.00028619796
          %v626 = vmul.f32 %v623, %v625
          %v627 = vadd.f32 %v626, 0.0036580483
          %v628 = vmul.f32 %v623, %v627
          %v629 = vadd.f32 %v628, 0.05243302
          %v630 = vmul.f32 %v623, %v629
          %v631 = vadd.f32 %v630, 0.18741608
          %v632 = vmul.f32 %v623, %v631
          %v633 = vadd.f32 %v632, 1.1283791
          %v634 = vmul.f32 %v614, %v633
          %v635 = vmul.f32 %v623, 3.8918573e-05
          %v636 = vadd.f32 %v635, 0.001143296
          %v637 = vmul.f32 %v623, %v636
          %v638 = vadd.f32 %v637, 0.014752088
          %v639 = vmul.f32 %v623, %v638
          %v640 = vadd.f32 %v639, 0.112945676
          %v641 = vmul.f32 %v623, %v640
          %v642 = vadd.f32 %v641, 0.4994258
          %v643 = vmul.f32 %v623, %v642
          %v644 = vadd.f32 %v643, 1.0
          %v645 = vrcp.pop %v644
          %v646 = vmul.f32 %v644, %v645
          %v647 = vsub.f32 1.0, %v646
          %v648 = vmul.f32 %v645, %v647
          %v649 = vadd.f32 %v645, %v648
          %vm650 = vweird.f32 %v644
          %vm651 = vweird.f32 %v645
          %vm652 = vmor %vm650, %vm651
          %v653 = vsel %vm652, %v645, %v649
          %v654 = vand.u32 2147483647, %v644
          %vm655 = vcmp.eq.f32.partialorder %v654, 8.507059e+37
          %v656 = vand.u32 %v644, 2147483648
          %v657 = vor.u32 1.1754944e-38, %v656
          %v658 = vsel %vm655, %v657, %v653
          %v659 = vmul.f32 %v634, %v658
          %v660 = vmin.f32 %v659, 1.0
          %v661 = vmax.f32 %v660, -1.0
          %v662 = vmul.f32 %v615, %v615
          %v663 = vmin.f32 16.0, %v662
          %v664 = vmul.f32 %v663, 2.1237322e-06
          %v665 = vadd.f32 %v664, 0.00028619796
          %v666 = vmul.f32 %v663, %v665
          %v667 = vadd.f32 %v666, 0.0036580483
          %v668 = vmul.f32 %v663, %v667
          %v669 = vadd.f32 %v668, 0.05243302
          %v670 = vmul.f32 %v663, %v669
          %v671 = vadd.f32 %v670, 0.18741608
          %v672 = vmul.f32 %v663, %v671
          %v673 = vadd.f32 %v672, 1.1283791
          %v674 = vmul.f32 %v615, %v673
          %v675 = vmul.f32 %v663, 3.8918573e-05
          %v676 = vadd.f32 %v675, 0.001143296
          %v677 = vmul.f32 %v663, %v676
          %v678 = vadd.f32 %v677, 0.014752088
          %v679 = vmul.f32 %v663, %v678
          %v680 = vadd.f32 %v679, 0.112945676
          %v681 = vmul.f32 %v663, %v680
          %v682 = vadd.f32 %v681, 0.4994258
          %v683 = vmul.f32 %v663, %v682
          %v684 = vadd.f32 %v683, 1.0
          %v685 = vrcp.pop %v684
          %v686 = vmul.f32 %v684, %v685
          %v687 = vsub.f32 1.0, %v686
          %v688 = vmul.f32 %v685, %v687
          %v689 = vadd.f32 %v685, %v688
          %vm690 = vweird.f32 %v684
          %vm691 = vweird.f32 %v685
          %vm692 = vmor %vm690, %vm691
          %v693 = vsel %vm692, %v685, %v689
          %v694 = vand.u32 2147483647, %v684
          %vm695 = vcmp.eq.f32.partialorder %v694, 8.507059e+37
          %v696 = vand.u32 %v684, 2147483648
          %v697 = vor.u32 1.1754944e-38, %v696
          %v698 = vsel %vm695, %v697, %v693
          %v699 = vmul.f32 %v674, %v698
          %v700 = vmin.f32 %v699, 1.0
          %v701 = vmax.f32 %v700, -1.0
          %v702 = vmul.f32 %v616, %v616
          %v703 = vmin.f32 16.0, %v702
          %v704 = vmul.f32 %v703, 2.1237322e-06
          %v705 = vadd.f32 %v704, 0.00028619796
          %v706 = vmul.f32 %v703, %v705
          %v707 = vadd.f32 %v706, 0.0036580483
          %v708 = vmul.f32 %v703, %v707
          %v709 = vadd.f32 %v708, 0.05243302
          %v710 = vmul.f32 %v703, %v709
          %v711 = vadd.f32 %v710, 0.18741608
          %v712 = vmul.f32 %v703, %v711
          %v713 = vadd.f32 %v712, 1.1283791
          %v714 = vmul.f32 %v616, %v713
          %v715 = vmul.f32 %v703, 3.8918573e-05
          %v716 = vadd.f32 %v715, 0.001143296
          %v717 = vmul.f32 %v703, %v716
          %v718 = vadd.f32 %v717, 0.014752088
          %v719 = vmul.f32 %v703, %v718
          %v720 = vadd.f32 %v719, 0.112945676
          %v721 = vmul.f32 %v703, %v720
          %v722 = vadd.f32 %v721, 0.4994258
          %v723 = vmul.f32 %v703, %v722
          %v724 = vadd.f32 %v723, 1.0
          %v725 = vrcp.pop %v724
          %v726 = vmul.f32 %v724, %v725
          %v727 = vsub.f32 1.0, %v726
          %v728 = vmul.f32 %v725, %v727
          %v729 = vadd.f32 %v725, %v728
          %vm730 = vweird.f32 %v724
          %vm731 = vweird.f32 %v725
          %vm732 = vmor %vm730, %vm731
          %v733 = vsel %vm732, %v725, %v729
          %v734 = vand.u32 2147483647, %v724
          %vm735 = vcmp.eq.f32.partialorder %v734, 8.507059e+37
          %v736 = vand.u32 %v724, 2147483648
          %v737 = vor.u32 1.1754944e-38, %v736
          %v738 = vsel %vm735, %v737, %v733
          %v739 = vmul.f32 %v714, %v738
          %v740 = vmin.f32 %v739, 1.0
          %v741 = vmax.f32 %v740, -1.0
          %v742 = vmul.f32 %v617, %v617
          %v743 = vmin.f32 16.0, %v742
          %v744 = vmul.f32 %v743, 2.1237322e-06
          %v745 = vadd.f32 %v744, 0.00028619796
          %v746 = vmul.f32 %v743, %v745
          %v747 = vadd.f32 %v746, 0.0036580483
          %v748 = vmul.f32 %v743, %v747
          %v749 = vadd.f32 %v748, 0.05243302
          %v750 = vmul.f32 %v743, %v749
          %v751 = vadd.f32 %v750, 0.18741608
          %v752 = vmul.f32 %v743, %v751
          %v753 = vadd.f32 %v752, 1.1283791
          %v754 = vmul.f32 %v617, %v753
          %v755 = vmul.f32 %v743, 3.8918573e-05
          %v756 = vadd.f32 %v755, 0.001143296
          %v757 = vmul.f32 %v743, %v756
          %v758 = vadd.f32 %v757, 0.014752088
          %v759 = vmul.f32 %v743, %v758
          %v760 = vadd.f32 %v759, 0.112945676
          %v761 = vmul.f32 %v743, %v760
          %v762 = vadd.f32 %v761, 0.4994258
          %v763 = vmul.f32 %v743, %v762
          %v764 = vadd.f32 %v763, 1.0
          %v765 = vrcp.pop %v764
          %v766 = vmul.f32 %v764, %v765
          %v767 = vsub.f32 1.0, %v766
          %v768 = vmul.f32 %v765, %v767
          %v769 = vadd.f32 %v765, %v768
          %vm770 = vweird.f32 %v764
          %vm771 = vweird.f32 %v765
          %vm772 = vmor %vm770, %vm771
          %v773 = vsel %vm772, %v765, %v769
          %v774 = vand.u32 2147483647, %v764
          %vm775 = vcmp.eq.f32.partialorder %v774, 8.507059e+37
          %v776 = vand.u32 %v764, 2147483648
          %v777 = vor.u32 1.1754944e-38, %v776
          %v778 = vsel %vm775, %v777, %v773
          %v779 = vmul.f32 %v754, %v778
          %v780 = vmin.f32 %v779, 1.0
          %v781 = vmax.f32 %v780, -1.0
          %v782 = vmul.f32 %v618, %v618
          %v783 = vmin.f32 16.0, %v782
          %v784 = vmul.f32 %v783, 2.1237322e-06
          %v785 = vadd.f32 %v784, 0.00028619796
          %v786 = vmul.f32 %v783, %v785
          %v787 = vadd.f32 %v786, 0.0036580483
          %v788 = vmul.f32 %v783, %v787
          %v789 = vadd.f32 %v788, 0.05243302
          %v790 = vmul.f32 %v783, %v789
          %v791 = vadd.f32 %v790, 0.18741608
          %v792 = vmul.f32 %v783, %v791
          %v793 = vadd.f32 %v792, 1.1283791
          %v794 = vmul.f32 %v618, %v793
          %v795 = vmul.f32 %v783, 3.8918573e-05
          %v796 = vadd.f32 %v795, 0.001143296
          %v797 = vmul.f32 %v783, %v796
          %v798 = vadd.f32 %v797, 0.014752088
          %v799 = vmul.f32 %v783, %v798
          %v800 = vadd.f32 %v799, 0.112945676
          %v801 = vmul.f32 %v783, %v800
          %v802 = vadd.f32 %v801, 0.4994258
          %v803 = vmul.f32 %v783, %v802
          %v804 = vadd.f32 %v803, 1.0
          %v805 = vrcp.pop %v804
          %v806 = vmul.f32 %v804, %v805
          %v807 = vsub.f32 1.0, %v806
          %v808 = vmul.f32 %v805, %v807
          %v809 = vadd.f32 %v805, %v808
          %vm810 = vweird.f32 %v804
          %vm811 = vweird.f32 %v805
          %vm812 = vmor %vm810, %vm811
          %v813 = vsel %vm812, %v805, %v809
          %v814 = vand.u32 2147483647, %v804
          %vm815 = vcmp.eq.f32.partialorder %v814, 8.507059e+37
          %v816 = vand.u32 %v804, 2147483648
          %v817 = vor.u32 1.1754944e-38, %v816
          %v818 = vsel %vm815, %v817, %v813
          %v819 = vmul.f32 %v794, %v818
          %v820 = vmin.f32 %v819, 1.0
          %v821 = vmax.f32 %v820, -1.0
          %v822 = vmul.f32 %v619, %v619
          %v823 = vmin.f32 16.0, %v822
          %v824 = vmul.f32 %v823, 2.1237322e-06
          %v825 = vadd.f32 %v824, 0.00028619796
          %v826 = vmul.f32 %v823, %v825
          %v827 = vadd.f32 %v826, 0.0036580483
          %v828 = vmul.f32 %v823, %v827
          %v829 = vadd.f32 %v828, 0.05243302
          %v830 = vmul.f32 %v823, %v829
          %v831 = vadd.f32 %v830, 0.18741608
          %v832 = vmul.f32 %v823, %v831
          %v833 = vadd.f32 %v832, 1.1283791
          %v834 = vmul.f32 %v619, %v833
          %v835 = vmul.f32 %v823, 3.8918573e-05
          %v836 = vadd.f32 %v835, 0.001143296
          %v837 = vmul.f32 %v823, %v836
          %v838 = vadd.f32 %v837, 0.014752088
          %v839 = vmul.f32 %v823, %v838
          %v840 = vadd.f32 %v839, 0.112945676
          %v841 = vmul.f32 %v823, %v840
          %v842 = vadd.f32 %v841, 0.4994258
          %v843 = vmul.f32 %v823, %v842
          %v844 = vadd.f32 %v843, 1.0
          %v845 = vrcp.pop %v844
          %v846 = vmul.f32 %v844, %v845
          %v847 = vsub.f32 1.0, %v846
          %v848 = vmul.f32 %v845, %v847
          %v849 = vadd.f32 %v845, %v848
          %vm850 = vweird.f32 %v844
          %vm851 = vweird.f32 %v845
          %vm852 = vmor %vm850, %vm851
          %v853 = vsel %vm852, %v845, %v849
          %v854 = vand.u32 2147483647, %v844
          %vm855 = vcmp.eq.f32.partialorder %v854, 8.507059e+37
          %v856 = vand.u32 %v844, 2147483648
          %v857 = vor.u32 1.1754944e-38, %v856
          %v858 = vsel %vm855, %v857, %v853
          %v859 = vmul.f32 %v834, %v858
          %v860 = vmin.f32 %v859, 1.0
          %v861 = vmax.f32 %v860, -1.0
          %v862 = vmul.f32 %v620, %v620
          %v863 = vmin.f32 16.0, %v862
          %v864 = vmul.f32 %v863, 2.1237322e-06
          %v865 = vadd.f32 %v864, 0.00028619796
          %v866 = vmul.f32 %v863, %v865
          %v867 = vadd.f32 %v866, 0.0036580483
          %v868 = vmul.f32 %v863, %v867
          %v869 = vadd.f32 %v868, 0.05243302
          %v870 = vmul.f32 %v863, %v869
          %v871 = vadd.f32 %v870, 0.18741608
          %v872 = vmul.f32 %v863, %v871
          %v873 = vadd.f32 %v872, 1.1283791
          %v874 = vmul.f32 %v620, %v873
          %v875 = vmul.f32 %v863, 3.8918573e-05
          %v876 = vadd.f32 %v875, 0.001143296
          %v877 = vmul.f32 %v863, %v876
          %v878 = vadd.f32 %v877, 0.014752088
          %v879 = vmul.f32 %v863, %v878
          %v880 = vadd.f32 %v879, 0.112945676
          %v881 = vmul.f32 %v863, %v880
          %v882 = vadd.f32 %v881, 0.4994258
          %v883 = vmul.f32 %v863, %v882
          %v884 = vadd.f32 %v883, 1.0
          %v885 = vrcp.pop %v884
          %v886 = vmul.f32 %v884, %v885
          %v887 = vsub.f32 1.0, %v886
          %v888 = vmul.f32 %v885, %v887
          %v889 = vadd.f32 %v885, %v888
          %vm890 = vweird.f32 %v884
          %vm891 = vweird.f32 %v885
          %vm892 = vmor %vm890, %vm891
          %v893 = vsel %vm892, %v885, %v889
          %v894 = vand.u32 2147483647, %v884
          %vm895 = vcmp.eq.f32.partialorder %v894, 8.507059e+37
          %v896 = vand.u32 %v884, 2147483648
          %v897 = vor.u32 1.1754944e-38, %v896
          %v898 = vsel %vm895, %v897, %v893
          %v899 = vmul.f32 %v874, %v898
          %v900 = vmin.f32 %v899, 1.0
          %v901 = vmax.f32 %v900, -1.0
          %v902 = vmul.f32 %v621, %v621
          %v903 = vmin.f32 16.0, %v902
          %v904 = vmul.f32 %v903, 2.1237322e-06
          %v905 = vadd.f32 %v904, 0.00028619796
          %v906 = vmul.f32 %v903, %v905
          %v907 = vadd.f32 %v906, 0.0036580483
          %v908 = vmul.f32 %v903, %v907
          %v909 = vadd.f32 %v908, 0.05243302
          %v910 = vmul.f32 %v903, %v909
          %v911 = vadd.f32 %v910, 0.18741608
          %v912 = vmul.f32 %v903, %v911
          %v913 = vadd.f32 %v912, 1.1283791
          %v914 = vmul.f32 %v621, %v913
          %v915 = vmul.f32 %v903, 3.8918573e-05
          %v916 = vadd.f32 %v915, 0.001143296
          %v917 = vmul.f32 %v903, %v916
          %v918 = vadd.f32 %v917, 0.014752088
          %v919 = vmul.f32 %v903, %v918
          %v920 = vadd.f32 %v919, 0.112945676
          %v921 = vmul.f32 %v903, %v920
          %v922 = vadd.f32 %v921, 0.4994258
          %v923 = vmul.f32 %v903, %v922
          %v924 = vadd.f32 %v923, 1.0
          %v925 = vrcp.pop %v924
          %v926 = vmul.f32 %v924, %v925
          %v927 = vsub.f32 1.0, %v926
          %v928 = vmul.f32 %v925, %v927
          %v929 = vadd.f32 %v925, %v928
          %vm930 = vweird.f32 %v924
          %vm931 = vweird.f32 %v925
          %vm932 = vmor %vm930, %vm931
          %v933 = vsel %vm932, %v925, %v929
          %v934 = vand.u32 2147483647, %v924
          %vm935 = vcmp.eq.f32.partialorder %v934, 8.507059e+37
          %v936 = vand.u32 %v924, 2147483648
          %v937 = vor.u32 1.1754944e-38, %v936
          %v938 = vsel %vm935, %v937, %v933
          %v939 = vmul.f32 %v914, %v938
          %v940 = vmin.f32 %v939, 1.0
          %v941 = vmax.f32 %v940, -1.0
          %v942 = vadd.f32 %v661, 1.0
          %v943 = vadd.f32 %v701, 1.0
          %v944 = vadd.f32 %v741, 1.0
          %v945 = vadd.f32 %v781, 1.0
          %v946 = vadd.f32 %v821, 1.0
          %v947 = vadd.f32 %v861, 1.0
          %v948 = vadd.f32 %v901, 1.0
          %v949 = vadd.f32 %v941, 1.0
          %v950 = vmul.f32 %v606, %v942
          %v951 = vmul.f32 %v607, %v943
          %v952 = vmul.f32 %v608, %v944
          %v953 = vmul.f32 %v609, %v945
          %v954 = vmul.f32 %v610, %v946
          %v955 = vmul.f32 %v611, %v947
          %v956 = vmul.f32 %v612, %v948
          %v957 = vmul.f32 %v613, %v949
          %958 = vadd.xlane.f32.xlu0 %v950
          %v959 = vpop.xlane.xlu0 %958
          %960 = vadd.xlane.f32.xlu0 %v951
          %v961 = vpop.xlane.xlu0 %960
          %962 = vadd.xlane.f32.xlu0 %v952
          %v963 = vpop.xlane.xlu0 %962
          %964 = vadd.xlane.f32.xlu0 %v953
          %v965 = vpop.xlane.xlu0 %964
          %966 = vadd.xlane.f32.xlu0 %v954
          %v967 = vpop.xlane.xlu0 %966
          %968 = vadd.xlane.f32.xlu0 %v955
          %v969 = vpop.xlane.xlu0 %968
          %970 = vadd.xlane.f32.xlu0 %v956
          %v971 = vpop.xlane.xlu0 %970
          %972 = vadd.xlane.f32.xlu0 %v957
          %v973 = vpop.xlane.xlu0 %972
          %v974 = vrcp.pop 128.0
          %v975 = vmul.f32 128.0, %v974
          %v976 = vsub.f32 1.0, %v975
          %v977 = vmul.f32 %v974, %v976
          %v978 = vadd.f32 %v974, %v977
          %vm979 = vweird.f32 %v974
          %v980 = vsel %vm979, %v974, %v978
          %v981 = vmul.f32 %v959, %v980
          %v982 = vmul.f32 %v961, %v980
          %v983 = vmul.f32 %v963, %v980
          %v984 = vmul.f32 %v965, %v980
          %v985 = vmul.f32 %v967, %v980
          %v986 = vmul.f32 %v969, %v980
          %v987 = vmul.f32 %v971, %v980
          %v988 = vmul.f32 %v973, %v980
          %v989 = vsub.f32 %v950, %v981
          %v990 = vsub.f32 %v951, %v982
          %v991 = vsub.f32 %v952, %v983
          %v992 = vsub.f32 %v953, %v984
          %v993 = vsub.f32 %v954, %v985
          %v994 = vsub.f32 %v955, %v986
          %v995 = vsub.f32 %v956, %v987
          %v996 = vsub.f32 %v957, %v988
          %v997 = vmul.f32 %v989, %v989
          %v998 = vmul.f32 %v990, %v990
          %v999 = vmul.f32 %v991, %v991
          %v1000 = vmul.f32 %v992, %v992
          %v1001 = vmul.f32 %v993, %v993
          %v1002 = vmul.f32 %v994, %v994
          %v1003 = vmul.f32 %v995, %v995
          %v1004 = vmul.f32 %v996, %v996
          %1005 = vadd.xlane.f32.xlu0 %v997
          %v1006 = vpop.xlane.xlu0 %1005
          %1007 = vadd.xlane.f32.xlu0 %v998
          %v1008 = vpop.xlane.xlu0 %1007
          %1009 = vadd.xlane.f32.xlu0 %v999
          %v1010 = vpop.xlane.xlu0 %1009
          %1011 = vadd.xlane.f32.xlu0 %v1000
          %v1012 = vpop.xlane.xlu0 %1011
          %1013 = vadd.xlane.f32.xlu0 %v1001
          %v1014 = vpop.xlane.xlu0 %1013
          %1015 = vadd.xlane.f32.xlu0 %v1002
          %v1016 = vpop.xlane.xlu0 %1015
          %1017 = vadd.xlane.f32.xlu0 %v1003
          %v1018 = vpop.xlane.xlu0 %1017
          %1019 = vadd.xlane.f32.xlu0 %v1004
          %v1020 = vpop.xlane.xlu0 %1019
          %v1021 = vmul.f32 %v1006, %v980
          %v1022 = vmul.f32 %v1008, %v980
          %v1023 = vmul.f32 %v1010, %v980
          %v1024 = vmul.f32 %v1012, %v980
          %v1025 = vmul.f32 %v1014, %v980
          %v1026 = vmul.f32 %v1016, %v980
          %v1027 = vmul.f32 %v1018, %v980
          %v1028 = vmul.f32 %v1020, %v980
          %v1029 = vadd.f32 %v1021, 1e-12
          %v1030 = vadd.f32 %v1022, 1e-12
          %v1031 = vadd.f32 %v1023, 1e-12
          %v1032 = vadd.f32 %v1024, 1e-12
          %v1033 = vadd.f32 %v1025, 1e-12
          %v1034 = vadd.f32 %v1026, 1e-12
          %v1035 = vadd.f32 %v1027, 1e-12
          %v1036 = vadd.f32 %v1028, 1e-12
          %v1037 = vrsqrt.pop %v1029
          %v1038 = vmul.f32 %v1037, %v1029
          %v1039 = vmul.f32 %v1038, %v1037
          %v1040 = vmul.f32 0.5, %v1039
          %v1041 = vsub.f32 1.5, %v1040
          %v1042 = vmul.f32 %v1037, %v1041
          %vm1043 = vweird.f32 %v1029
          %vm1044 = vweird.f32 %v1037
          %vm1045 = vmor %vm1043, %vm1044
          %v1046 = vsel %vm1045, %v1037, %v1042
          %v1047 = vrsqrt.pop %v1030
          %v1048 = vmul.f32 %v1047, %v1030
          %v1049 = vmul.f32 %v1048, %v1047
          %v1050 = vmul.f32 0.5, %v1049
          %v1051 = vsub.f32 1.5, %v1050
          %v1052 = vmul.f32 %v1047, %v1051
          %vm1053 = vweird.f32 %v1030
          %vm1054 = vweird.f32 %v1047
          %vm1055 = vmor %vm1053, %vm1054
          %v1056 = vsel %vm1055, %v1047, %v1052
          %v1057 = vrsqrt.pop %v1031
          %v1058 = vmul.f32 %v1057, %v1031
          %v1059 = vmul.f32 %v1058, %v1057
          %v1060 = vmul.f32 0.5, %v1059
          %v1061 = vsub.f32 1.5, %v1060
          %v1062 = vmul.f32 %v1057, %v1061
          %vm1063 = vweird.f32 %v1031
          %vm1064 = vweird.f32 %v1057
          %vm1065 = vmor %vm1063, %vm1064
          %v1066 = vsel %vm1065, %v1057, %v1062
          %v1067 = vrsqrt.pop %v1032
          %v1068 = vmul.f32 %v1067, %v1032
          %v1069 = vmul.f32 %v1068, %v1067
          %v1070 = vmul.f32 0.5, %v1069
          %v1071 = vsub.f32 1.5, %v1070
          %v1072 = vmul.f32 %v1067, %v1071
          %vm1073 = vweird.f32 %v1032
          %vm1074 = vweird.f32 %v1067
          %vm1075 = vmor %vm1073, %vm1074
          %v1076 = vsel %vm1075, %v1067, %v1072
          %v1077 = vrsqrt.pop %v1033
          %v1078 = vmul.f32 %v1077, %v1033
          %v1079 = vmul.f32 %v1078, %v1077
          %v1080 = vmul.f32 0.5, %v1079
          %v1081 = vsub.f32 1.5, %v1080
          %v1082 = vmul.f32 %v1077, %v1081
          %vm1083 = vweird.f32 %v1033
          %vm1084 = vweird.f32 %v1077
          %vm1085 = vmor %vm1083, %vm1084
          %v1086 = vsel %vm1085, %v1077, %v1082
          %v1087 = vrsqrt.pop %v1034
          %v1088 = vmul.f32 %v1087, %v1034
          %v1089 = vmul.f32 %v1088, %v1087
          %v1090 = vmul.f32 0.5, %v1089
          %v1091 = vsub.f32 1.5, %v1090
          %v1092 = vmul.f32 %v1087, %v1091
          %vm1093 = vweird.f32 %v1034
          %vm1094 = vweird.f32 %v1087
          %vm1095 = vmor %vm1093, %vm1094
          %v1096 = vsel %vm1095, %v1087, %v1092
          %v1097 = vrsqrt.pop %v1035
          %v1098 = vmul.f32 %v1097, %v1035
          %v1099 = vmul.f32 %v1098, %v1097
          %v1100 = vmul.f32 0.5, %v1099
          %v1101 = vsub.f32 1.5, %v1100
          %v1102 = vmul.f32 %v1097, %v1101
          %vm1103 = vweird.f32 %v1035
          %vm1104 = vweird.f32 %v1097
          %vm1105 = vmor %vm1103, %vm1104
          %v1106 = vsel %vm1105, %v1097, %v1102
          %v1107 = vrsqrt.pop %v1036
          %v1108 = vmul.f32 %v1107, %v1036
          %v1109 = vmul.f32 %v1108, %v1107
          %v1110 = vmul.f32 0.5, %v1109
          %v1111 = vsub.f32 1.5, %v1110
          %v1112 = vmul.f32 %v1107, %v1111
          %vm1113 = vweird.f32 %v1036
          %vm1114 = vweird.f32 %v1107
          %vm1115 = vmor %vm1113, %vm1114
          %v1116 = vsel %vm1115, %v1107, %v1112
          %v1117 = vmul.f32 %v989, %v1046
          %v1118 = vmul.f32 %v990, %v1056
          %v1119 = vmul.f32 %v991, %v1066
          %v1120 = vmul.f32 %v992, %v1076
          %v1121 = vmul.f32 %v993, %v1086
          %v1122 = vmul.f32 %v994, %v1096
          %v1123 = vmul.f32 %v995, %v1106
          %v1124 = vmul.f32 %v996, %v1116
          %v1125 = vld [vmem:[#allocation9] sm:$0x1]
          %v1127 = vperm.slane %v1125, 0
          %v1129 = vmul.f32 %v1117, %v1127
          %v1130 = vmul.f32 %v1118, %v1127
          %v1131 = vmul.f32 %v1119, %v1127
          %v1132 = vmul.f32 %v1120, %v1127
          %v1133 = vmul.f32 %v1121, %v1127
          %v1134 = vmul.f32 %v1122, %v1127
          %v1135 = vmul.f32 %v1123, %v1127
          %v1136 = vmul.f32 %v1124, %v1127
          %v1137 = vld [vmem:[#allocation11] sm:$0x1]
          %v1139 = vperm.slane %v1137, 0
          %v1141 = vadd.f32 %v1129, %v1139
          %v1142 = vadd.f32 %v1130, %v1139
          %v1143 = vadd.f32 %v1131, %v1139
          %v1144 = vadd.f32 %v1132, %v1139
          %v1145 = vadd.f32 %v1133, %v1139
          %v1146 = vadd.f32 %v1134, %v1139
          %v1147 = vadd.f32 %v1135, %v1139
          %v1148 = vadd.f32 %v1136, %v1139
          %v1149 = vpack.c.bf16 %v1141, %v1141
          %v1150 = vpack.c.bf16 %v1142, %v1142
          %v1151 = vpack.c.bf16 %v1143, %v1143
          %v1152 = vpack.c.bf16 %v1144, %v1144
          %v1153 = vpack.c.bf16 %v1145, %v1145
          %v1154 = vpack.c.bf16 %v1146, %v1146
          %v1155 = vpack.c.bf16 %v1147, %v1147
          %v1156 = vpack.c.bf16 %v1148, %v1148
          %1157 = vst [vmem:[#allocation2] sm:$0xf] %v1149
          %1158 = vst [vmem:[#allocation2 + $0x4] sm:$0xf] %v1150
          %1159 = vst [vmem:[#allocation2 + $0x8] sm:$0xf] %v1151
          %1160 = vst [vmem:[#allocation2 + $0xc] sm:$0xf] %v1152
          %1161 = vst [vmem:[#allocation2 + $0x10] sm:$0xf] %v1153
          %1162 = vst [vmem:[#allocation2 + $0x14] sm:$0xf] %v1154
          %1163 = vst [vmem:[#allocation2 + $0x18] sm:$0xf] %v1155
          %1164 = vst [vmem:[#allocation2 + $0x1c] sm:$0xf] %v1156
          %1165 = vst [vmem:[#allocation3] sm:$0xff] -inf
          %1166 = vst [vmem:[#allocation3 + $0x8] sm:$0xff] -inf
          %1167 = vst [vmem:[#allocation3 + $0x10] sm:$0xff] -inf
          %1168 = vst [vmem:[#allocation3 + $0x18] sm:$0xff] -inf
          %1169 = vst [vmem:[#allocation3 + $0x20] sm:$0xff] -inf
          %1170 = vst [vmem:[#allocation3 + $0x28] sm:$0xff] -inf
          %1171 = vst [vmem:[#allocation3 + $0x30] sm:$0xff] -inf
          %1172 = vst [vmem:[#allocation3 + $0x38] sm:$0xff] -inf
          %1173 = vst [vmem:[#allocation4] sm:$0xff] 0.0
          %1174 = vst [vmem:[#allocation4 + $0x8] sm:$0xff] 0.0
          %1175 = vst [vmem:[#allocation4 + $0x10] sm:$0xff] 0.0
          %1176 = vst [vmem:[#allocation4 + $0x18] sm:$0xff] 0.0
          %1177 = vst [vmem:[#allocation4 + $0x20] sm:$0xff] 0.0
          %1178 = vst [vmem:[#allocation4 + $0x28] sm:$0xff] 0.0
          %1179 = vst [vmem:[#allocation4 + $0x30] sm:$0xff] 0.0
          %1180 = vst [vmem:[#allocation4 + $0x38] sm:$0xff] 0.0
          %1181 = vst [vmem:[#allocation5] sm:$0xff] 0.0
          %1182 = vst [vmem:[#allocation5 + $0x8] sm:$0xff] 0.0
          %1183 = vst [vmem:[#allocation5 + $0x10] sm:$0xff] 0.0
          %1184 = vst [vmem:[#allocation5 + $0x18] sm:$0xff] 0.0
          %1185 = vst [vmem:[#allocation5 + $0x20] sm:$0xff] 0.0
          %1186 = vst [vmem:[#allocation5 + $0x28] sm:$0xff] 0.0
          %1187 = vst [vmem:[#allocation5 + $0x30] sm:$0xff] 0.0
          %1188 = vst [vmem:[#allocation5 + $0x38] sm:$0xff] 0.0
          %vm1189 = vcmask 7168
          %1190 = vst.msk [vmem:[%s491] sm:$0xff] %vm1189, 0.0
          %1191 = vst.msk [vmem:[%s491 + $0x8] sm:$0xff] %vm1189, 0.0
          %1192 = vst.msk [vmem:[%s491 + $0x10] sm:$0xff] %vm1189, 0.0
          %1193 = vst.msk [vmem:[%s491 + $0x18] sm:$0xff] %vm1189, 0.0
          %1194 = vst.msk [vmem:[%s491 + $0x20] sm:$0xff] %vm1189, 0.0
          %1195 = vst.msk [vmem:[%s491 + $0x28] sm:$0xff] %vm1189, 0.0
          %1196 = vst.msk [vmem:[%s491 + $0x30] sm:$0xff] %vm1189, 0.0
          %1197 = vst.msk [vmem:[%s491 + $0x38] sm:$0xff] %vm1189, 0.0
        $region72: #{tpu_custom_call.1} parent=51 // pred_fallthru
          _
        %v1198 = vld [vmem:[#allocation2] sm:$0xf]
        %v1199 = vld [vmem:[#allocation2 + $0x4] sm:$0xf]
        %v1200 = vld [vmem:[#allocation2 + $0x8] sm:$0xf]
        %v1201 = vld [vmem:[#allocation2 + $0xc] sm:$0xf]
        %v1202 = vld [vmem:[#allocation2 + $0x10] sm:$0xf]
        %v1203 = vld [vmem:[#allocation2 + $0x14] sm:$0xf]
        %v1204 = vld [vmem:[#allocation2 + $0x18] sm:$0xf]
        %v1205 = vld [vmem:[#allocation2 + $0x1c] sm:$0xf]
        %v1206 = vld [vmem:[%s412] sm:$0xff]
        %v1207 = vld [vmem:[%s412 + $0x8] sm:$0xff]
        %v1208 = vld [vmem:[%s412 + $0x10] sm:$0xff]
        %v1209 = vld [vmem:[%s412 + $0x18] sm:$0xff]
        %v1210 = vld [vmem:[%s412 + $0x20] sm:$0xff]
        %v1211 = vld [vmem:[%s412 + $0x28] sm:$0xff]
        %v1212 = vld [vmem:[%s412 + $0x30] sm:$0xff]
        %v1213 = vld [vmem:[%s412 + $0x38] sm:$0xff]
        %v1214 = vld [vmem:[%s412 + $0x40] sm:$0xff]
        %v1215 = vld [vmem:[%s412 + $0x48] sm:$0xff]
        %v1216 = vld [vmem:[%s412 + $0x50] sm:$0xff]
        %v1217 = vld [vmem:[%s412 + $0x58] sm:$0xff]
        %v1218 = vld [vmem:[%s412 + $0x60] sm:$0xff]
        %v1219 = vld [vmem:[%s412 + $0x68] sm:$0xff]
        %v1220 = vld [vmem:[%s412 + $0x70] sm:$0xff]
        %v1221 = vld [vmem:[%s412 + $0x78] sm:$0xff]
        %v1222 = vld [vmem:[%s477] sm:$0x3]
        %v1224 = vperm.slane %v1222, 0
        %v1225 = vperm.slane %v1222, 1
        %v1236 = vunpack.c.l.b16 %v1198
        %v1237 = vunpack.c.l.b16 %v1199
        %v1238 = vunpack.c.l.b16 %v1200
        %v1239 = vunpack.c.l.b16 %v1201
        %v1240 = vunpack.c.l.b16 %v1202
        %v1241 = vunpack.c.l.b16 %v1203
        %v1242 = vunpack.c.l.b16 %v1204
        %v1243 = vunpack.c.l.b16 %v1205
        %v1244 = vpack.c.b16 %v1237, %v1236
        %v1245 = vpack.c.b16 %v1239, %v1238
        %v1246 = vpack.c.b16 %v1241, %v1240
        %v1247 = vpack.c.b16 %v1243, %v1242
        %v1268 = vunpack.c.l.b16 %v1206
        %v1269 = vunpack.c.h.b16 %v1206
        %v1270 = vunpack.c.l.b16 %v1207
        %v1271 = vunpack.c.h.b16 %v1207
        %v1272 = vunpack.c.l.b16 %v1208
        %v1273 = vunpack.c.h.b16 %v1208
        %v1274 = vunpack.c.l.b16 %v1209
        %v1275 = vunpack.c.h.b16 %v1209
        %v1276 = vunpack.c.l.b16 %v1210
        %v1277 = vunpack.c.h.b16 %v1210
        %v1278 = vunpack.c.l.b16 %v1211
        %v1279 = vunpack.c.h.b16 %v1211
        %v1280 = vunpack.c.l.b16 %v1212
        %v1281 = vunpack.c.h.b16 %v1212
        %v1282 = vunpack.c.l.b16 %v1213
        %v1283 = vunpack.c.h.b16 %v1213
        %v1284 = vunpack.c.l.b16 %v1214
        %v1285 = vunpack.c.h.b16 %v1214
        %v1286 = vunpack.c.l.b16 %v1215
        %v1287 = vunpack.c.h.b16 %v1215
        %v1288 = vunpack.c.l.b16 %v1216
        %v1289 = vunpack.c.h.b16 %v1216
        %v1290 = vunpack.c.l.b16 %v1217
        %v1291 = vunpack.c.h.b16 %v1217
        %v1292 = vunpack.c.l.b16 %v1218
        %v1293 = vunpack.c.h.b16 %v1218
        %v1294 = vunpack.c.l.b16 %v1219
        %v1295 = vunpack.c.h.b16 %v1219
        %v1296 = vunpack.c.l.b16 %v1220
        %v1297 = vunpack.c.h.b16 %v1220
        %v1298 = vunpack.c.l.b16 %v1221
        %v1299 = vunpack.c.h.b16 %v1221
        %v1300 = vpack.c.b16 %v1270, %v1268
        %v1301 = vpack.c.b16 %v1271, %v1269
        %v1302 = vpack.c.b16 %v1274, %v1272
        %v1303 = vpack.c.b16 %v1275, %v1273
        %v1304 = vpack.c.b16 %v1278, %v1276
        %v1305 = vpack.c.b16 %v1279, %v1277
        %v1306 = vpack.c.b16 %v1282, %v1280
        %v1307 = vpack.c.b16 %v1283, %v1281
        %v1308 = vpack.c.b16 %v1286, %v1284
        %v1309 = vpack.c.b16 %v1287, %v1285
        %v1310 = vpack.c.b16 %v1290, %v1288
        %v1311 = vpack.c.b16 %v1291, %v1289
        %v1312 = vpack.c.b16 %v1294, %v1292
        %v1313 = vpack.c.b16 %v1295, %v1293
        %v1314 = vpack.c.b16 %v1298, %v1296
        %v1315 = vpack.c.b16 %v1299, %v1297
        %1332 = vmatpush.bf16.msra.mxu0 %v1314
        %1333 = vmatpush.bf16.msra.mxu0 %v1312
        %1334 = vmatpush.bf16.msra.mxu0 %v1310
        %1335 = vmatpush.bf16.msra.mxu0 %v1308
        %1336 = vmatpush.bf16.msra.mxu0 %v1306
        %1337 = vmatpush.bf16.msra.mxu0 %v1304
        %1338 = vmatpush.bf16.msra.mxu0 %v1302
        %1339 = vmatpush.bf16.msra.mxu0 %v1300
        %1340 = vmatmul.bf16.gmra.mxu0 %v1244
        %v1341 = vpop.f32.mrf.mxu0
        %v1342 = vadd.f32 %v1224, %v1341
        %v1343 = vpop.f32.mrf.mxu0
        %v1344 = vadd.f32 %v1224, %v1343
        %1345 = vmatmul.bf16.gmra.mxu0 %v1245
        %v1346 = vpop.f32.mrf.mxu0
        %v1347 = vadd.f32 %v1224, %v1346
        %v1348 = vpop.f32.mrf.mxu0
        %v1349 = vadd.f32 %v1224, %v1348
        %1350 = vmatmul.bf16.gmra.mxu0 %v1246
        %v1351 = vpop.f32.mrf.mxu0
        %v1352 = vadd.f32 %v1224, %v1351
        %v1353 = vpop.f32.mrf.mxu0
        %v1354 = vadd.f32 %v1224, %v1353
        %1355 = vmatmul.bf16.gmra.mxu0 %v1247
        %v1356 = vpop.f32.mrf.mxu0
        %v1357 = vadd.f32 %v1224, %v1356
        %v1358 = vpop.f32.mrf.mxu0
        %v1359 = vadd.f32 %v1224, %v1358
        %1360 = vdwg.mxu0
        %1361 = vmatpush.bf16.msra.mxu0 %v1315
        %1362 = vmatpush.bf16.msra.mxu0 %v1313
        %1363 = vmatpush.bf16.msra.mxu0 %v1311
        %1364 = vmatpush.bf16.msra.mxu0 %v1309
        %1365 = vmatpush.bf16.msra.mxu0 %v1307
        %1366 = vmatpush.bf16.msra.mxu0 %v1305
        %1367 = vmatpush.bf16.msra.mxu0 %v1303
        %1368 = vmatpush.bf16.msra.mxu0 %v1301
        %1369 = vmatmul.bf16.gmra.mxu0 %v1244
        %v1370 = vpop.f32.mrf.mxu0
        %v1371 = vadd.f32 %v1225, %v1370
        %v1372 = vpop.f32.mrf.mxu0
        %v1373 = vadd.f32 %v1225, %v1372
        %1374 = vmatmul.bf16.gmra.mxu0 %v1245
        %v1375 = vpop.f32.mrf.mxu0
        %v1376 = vadd.f32 %v1225, %v1375
        %v1377 = vpop.f32.mrf.mxu0
        %v1378 = vadd.f32 %v1225, %v1377
        %1379 = vmatmul.bf16.gmra.mxu0 %v1246
        %v1380 = vpop.f32.mrf.mxu0
        %v1381 = vadd.f32 %v1225, %v1380
        %v1382 = vpop.f32.mrf.mxu0
        %v1383 = vadd.f32 %v1225, %v1382
        %1384 = vmatmul.bf16.gmra.mxu0 %v1247
        %v1385 = vpop.f32.mrf.mxu0
        %v1386 = vadd.f32 %v1225, %v1385
        %v1387 = vpop.f32.mrf.mxu0
        %v1388 = vadd.f32 %v1225, %v1387
        %1389 = vdwg.mxu0
        %1390 = vst [vmem:[%s459] sm:$0xff] %v1342
        %1391 = vst [vmem:[%s459 + $0x8] sm:$0xff] %v1371
        %1392 = vst [vmem:[%s459 + $0x10] sm:$0xff] %v1344
        %1393 = vst [vmem:[%s459 + $0x18] sm:$0xff] %v1373
        %1394 = vst [vmem:[%s459 + $0x20] sm:$0xff] %v1347
        %1395 = vst [vmem:[%s459 + $0x28] sm:$0xff] %v1376
        %1396 = vst [vmem:[%s459 + $0x30] sm:$0xff] %v1349
        %1397 = vst [vmem:[%s459 + $0x38] sm:$0xff] %v1378
        %1398 = vst [vmem:[%s459 + $0x40] sm:$0xff] %v1352
        %1399 = vst [vmem:[%s459 + $0x48] sm:$0xff] %v1381
        %1400 = vst [vmem:[%s459 + $0x50] sm:$0xff] %v1354
        %1401 = vst [vmem:[%s459 + $0x58] sm:$0xff] %v1383
        %1402 = vst [vmem:[%s459 + $0x60] sm:$0xff] %v1357
        %1403 = vst [vmem:[%s459 + $0x68] sm:$0xff] %v1386
        %1404 = vst [vmem:[%s459 + $0x70] sm:$0xff] %v1359
        %1405 = vst [vmem:[%s459 + $0x78] sm:$0xff] %v1388
        %v1406 = vmax.f32 %v1342, %v1371
        %v1407 = vmax.f32 %v1344, %v1373
        %v1408 = vmax.f32 %v1347, %v1376
        %v1409 = vmax.f32 %v1349, %v1378
        %v1410 = vmax.f32 %v1352, %v1381
        %v1411 = vmax.f32 %v1354, %v1383
        %v1412 = vmax.f32 %v1357, %v1386
        %v1413 = vmax.f32 %v1359, %v1388
        %v1414 = vld [vmem:[#allocation3] sm:$0xff]
        %v1415 = vld [vmem:[#allocation3 + $0x8] sm:$0xff]
        %v1416 = vld [vmem:[#allocation3 + $0x10] sm:$0xff]
        %v1417 = vld [vmem:[#allocation3 + $0x18] sm:$0xff]
        %v1418 = vld [vmem:[#allocation3 + $0x20] sm:$0xff]
        %v1419 = vld [vmem:[#allocation3 + $0x28] sm:$0xff]
        %v1420 = vld [vmem:[#allocation3 + $0x30] sm:$0xff]
        %v1421 = vld [vmem:[#allocation3 + $0x38] sm:$0xff]
        %v1422 = vmax.f32 %v1414, %v1406
        %v1423 = vmax.f32 %v1415, %v1407
        %v1424 = vmax.f32 %v1416, %v1408
        %v1425 = vmax.f32 %v1417, %v1409
        %v1426 = vmax.f32 %v1418, %v1410
        %v1427 = vmax.f32 %v1419, %v1411
        %v1428 = vmax.f32 %v1420, %v1412
        %v1429 = vmax.f32 %v1421, %v1413
        %v1430 = vld [vmem:[#allocation4] sm:$0xff]
        %v1431 = vld [vmem:[#allocation4 + $0x8] sm:$0xff]
        %v1432 = vld [vmem:[#allocation4 + $0x10] sm:$0xff]
        %v1433 = vld [vmem:[#allocation4 + $0x18] sm:$0xff]
        %v1434 = vld [vmem:[#allocation4 + $0x20] sm:$0xff]
        %v1435 = vld [vmem:[#allocation4 + $0x28] sm:$0xff]
        %v1436 = vld [vmem:[#allocation4 + $0x30] sm:$0xff]
        %v1437 = vld [vmem:[#allocation4 + $0x38] sm:$0xff]
        %v1438 = vsub.f32 %v1414, %v1422
        %v1439 = vsub.f32 %v1415, %v1423
        %v1440 = vsub.f32 %v1416, %v1424
        %v1441 = vsub.f32 %v1417, %v1425
        %v1442 = vsub.f32 %v1418, %v1426
        %v1443 = vsub.f32 %v1419, %v1427
        %v1444 = vsub.f32 %v1420, %v1428
        %v1445 = vsub.f32 %v1421, %v1429
        %v1446 = vmul.f32 %v1438, 1.442695
        %v1447 = vpow.pop %v1446
        %v1448 = vmul.f32 %v1439, 1.442695
        %v1449 = vpow.pop %v1448
        %v1450 = vmul.f32 %v1440, 1.442695
        %v1451 = vpow.pop %v1450
        %v1452 = vmul.f32 %v1441, 1.442695
        %v1453 = vpow.pop %v1452
        %v1454 = vmul.f32 %v1442, 1.442695
        %v1455 = vpow.pop %v1454
        %v1456 = vmul.f32 %v1443, 1.442695
        %v1457 = vpow.pop %v1456
        %v1458 = vmul.f32 %v1444, 1.442695
        %v1459 = vpow.pop %v1458
        %v1460 = vmul.f32 %v1445, 1.442695
        %v1461 = vpow.pop %v1460
        %v1462 = vmul.f32 %v1430, %v1447
        %v1463 = vmul.f32 %v1431, %v1449
        %v1464 = vmul.f32 %v1432, %v1451
        %v1465 = vmul.f32 %v1433, %v1453
        %v1466 = vmul.f32 %v1434, %v1455
        %v1467 = vmul.f32 %v1435, %v1457
        %v1468 = vmul.f32 %v1436, %v1459
        %v1469 = vmul.f32 %v1437, %v1461
        %v1470 = vld [vmem:[#allocation5] sm:$0xff]
        %v1471 = vld [vmem:[#allocation5 + $0x8] sm:$0xff]
        %v1472 = vld [vmem:[#allocation5 + $0x10] sm:$0xff]
        %v1473 = vld [vmem:[#allocation5 + $0x18] sm:$0xff]
        %v1474 = vld [vmem:[#allocation5 + $0x20] sm:$0xff]
        %v1475 = vld [vmem:[#allocation5 + $0x28] sm:$0xff]
        %v1476 = vld [vmem:[#allocation5 + $0x30] sm:$0xff]
        %v1477 = vld [vmem:[#allocation5 + $0x38] sm:$0xff]
        %v1478 = vld [vmem:[%s483] sm:$0xff]
        %v1479 = vld [vmem:[%s483 + $0x8] sm:$0xff]
        %v1480 = vld [vmem:[%s483 + $0x10] sm:$0xff]
        %v1481 = vld [vmem:[%s483 + $0x18] sm:$0xff]
        %v1482 = vld [vmem:[%s483 + $0x20] sm:$0xff]
        %v1483 = vld [vmem:[%s483 + $0x28] sm:$0xff]
        %v1484 = vld [vmem:[%s483 + $0x30] sm:$0xff]
        %v1485 = vld [vmem:[%s483 + $0x38] sm:$0xff]
        %s1486 = smul.u32 %s34, 256
        %v1487 = vstv %s1486
        %v1488 = vsub.s32 %v1478, %v1487
        %v1489 = vsub.s32 %v1479, %v1487
        %v1490 = vsub.s32 %v1480, %v1487
        %v1491 = vsub.s32 %v1481, %v1487
        %v1492 = vsub.s32 %v1482, %v1487
        %v1493 = vsub.s32 %v1483, %v1487
        %v1494 = vsub.s32 %v1484, %v1487
        %v1495 = vsub.s32 %v1485, %v1487
        %v1496 = vlaneseq
        %v1497 = vand.u32 %v1496, 127
        %v1498 = vsub.f32 %v1342, %v1422
        %v1499 = vsub.f32 %v1344, %v1423
        %v1500 = vsub.f32 %v1347, %v1424
        %v1501 = vsub.f32 %v1349, %v1425
        %v1502 = vsub.f32 %v1352, %v1426
        %v1503 = vsub.f32 %v1354, %v1427
        %v1504 = vsub.f32 %v1357, %v1428
        %v1505 = vsub.f32 %v1359, %v1429
        %v1506 = vmul.f32 %v1498, 1.442695
        %v1507 = vpow.pop %v1506
        %v1508 = vmul.f32 %v1499, 1.442695
        %v1509 = vpow.pop %v1508
        %v1510 = vmul.f32 %v1500, 1.442695
        %v1511 = vpow.pop %v1510
        %v1512 = vmul.f32 %v1501, 1.442695
        %v1513 = vpow.pop %v1512
        %v1514 = vmul.f32 %v1502, 1.442695
        %v1515 = vpow.pop %v1514
        %v1516 = vmul.f32 %v1503, 1.442695
        %v1517 = vpow.pop %v1516
        %v1518 = vmul.f32 %v1504, 1.442695
        %v1519 = vpow.pop %v1518
        %v1520 = vmul.f32 %v1505, 1.442695
        %v1521 = vpow.pop %v1520
        %v1522 = vadd.f32 %v1462, %v1507
        %v1523 = vadd.f32 %v1463, %v1509
        %v1524 = vadd.f32 %v1464, %v1511
        %v1525 = vadd.f32 %v1465, %v1513
        %v1526 = vadd.f32 %v1466, %v1515
        %v1527 = vadd.f32 %v1467, %v1517
        %v1528 = vadd.f32 %v1468, %v1519
        %v1529 = vadd.f32 %v1469, %v1521
        %1530 = vset.pattern.permute.xlu0 0
        %1531 = vperm.xlu0 %1530, %v1488
        %v1532 = vpop.permute.xlu0 %1531
        %1533 = vset.pattern.permute.xlu0 0
        %1534 = vperm.xlu0 %1533, %v1489
        %v1535 = vpop.permute.xlu0 %1534
        %1536 = vset.pattern.permute.xlu0 0
        %1537 = vperm.xlu0 %1536, %v1490
        %v1538 = vpop.permute.xlu0 %1537
        %1539 = vset.pattern.permute.xlu0 0
        %1540 = vperm.xlu0 %1539, %v1491
        %v1541 = vpop.permute.xlu0 %1540
        %1542 = vset.pattern.permute.xlu0 0
        %1543 = vperm.xlu0 %1542, %v1492
        %v1544 = vpop.permute.xlu0 %1543
        %1545 = vset.pattern.permute.xlu0 0
        %1546 = vperm.xlu0 %1545, %v1493
        %v1547 = vpop.permute.xlu0 %1546
        %1548 = vset.pattern.permute.xlu0 0
        %1549 = vperm.xlu0 %1548, %v1494
        %v1550 = vpop.permute.xlu0 %1549
        %1551 = vset.pattern.permute.xlu0 0
        %1552 = vperm.xlu0 %1551, %v1495
        %v1553 = vpop.permute.xlu0 %1552
        %vm1554 = vcmp.eq.s32.totalorder %v1497, %v1532
        %vm1555 = vcmp.eq.s32.totalorder %v1497, %v1535
        %vm1556 = vcmp.eq.s32.totalorder %v1497, %v1538
        %vm1557 = vcmp.eq.s32.totalorder %v1497, %v1541
        %vm1558 = vcmp.eq.s32.totalorder %v1497, %v1544
        %vm1559 = vcmp.eq.s32.totalorder %v1497, %v1547
        %vm1560 = vcmp.eq.s32.totalorder %v1497, %v1550
        %vm1561 = vcmp.eq.s32.totalorder %v1497, %v1553
        %v1562 = vsel %vm1554, %v1342, 0.0
        %v1563 = vsel %vm1555, %v1344, 0.0
        %v1564 = vsel %vm1556, %v1347, 0.0
        %v1565 = vsel %vm1557, %v1349, 0.0
        %v1566 = vsel %vm1558, %v1352, 0.0
        %v1567 = vsel %vm1559, %v1354, 0.0
        %v1568 = vsel %vm1560, %v1357, 0.0
        %v1569 = vsel %vm1561, %v1359, 0.0
        %v1570 = vadd.f32 %v1470, %v1562
        %v1571 = vadd.f32 %v1471, %v1563
        %v1572 = vadd.f32 %v1472, %v1564
        %v1573 = vadd.f32 %v1473, %v1565
        %v1574 = vadd.f32 %v1474, %v1566
        %v1575 = vadd.f32 %v1475, %v1567
        %v1576 = vadd.f32 %v1476, %v1568
        %v1577 = vadd.f32 %v1477, %v1569
        %v1578 = vsub.f32 %v1371, %v1422
        %v1579 = vsub.f32 %v1373, %v1423
        %v1580 = vsub.f32 %v1376, %v1424
        %v1581 = vsub.f32 %v1378, %v1425
        %v1582 = vsub.f32 %v1381, %v1426
        %v1583 = vsub.f32 %v1383, %v1427
        %v1584 = vsub.f32 %v1386, %v1428
        %v1585 = vsub.f32 %v1388, %v1429
        %v1586 = vmul.f32 %v1578, 1.442695
        %v1587 = vpow.pop %v1586
        %v1588 = vmul.f32 %v1579, 1.442695
        %v1589 = vpow.pop %v1588
        %v1590 = vmul.f32 %v1580, 1.442695
        %v1591 = vpow.pop %v1590
        %v1592 = vmul.f32 %v1581, 1.442695
        %v1593 = vpow.pop %v1592
        %v1594 = vmul.f32 %v1582, 1.442695
        %v1595 = vpow.pop %v1594
        %v1596 = vmul.f32 %v1583, 1.442695
        %v1597 = vpow.pop %v1596
        %v1598 = vmul.f32 %v1584, 1.442695
        %v1599 = vpow.pop %v1598
        %v1600 = vmul.f32 %v1585, 1.442695
        %v1601 = vpow.pop %v1600
        %v1602 = vadd.f32 %v1522, %v1587
        %v1603 = vadd.f32 %v1523, %v1589
        %v1604 = vadd.f32 %v1524, %v1591
        %v1605 = vadd.f32 %v1525, %v1593
        %v1606 = vadd.f32 %v1526, %v1595
        %v1607 = vadd.f32 %v1527, %v1597
        %v1608 = vadd.f32 %v1528, %v1599
        %v1609 = vadd.f32 %v1529, %v1601
        %v1610 = vsub.s32 %v1488, 128
        %v1611 = vsub.s32 %v1489, 128
        %v1612 = vsub.s32 %v1490, 128
        %v1613 = vsub.s32 %v1491, 128
        %v1614 = vsub.s32 %v1492, 128
        %v1615 = vsub.s32 %v1493, 128
        %v1616 = vsub.s32 %v1494, 128
        %v1617 = vsub.s32 %v1495, 128
        %1618 = vset.pattern.permute.xlu0 0
        %1619 = vperm.xlu0 %1618, %v1610
        %v1620 = vpop.permute.xlu0 %1619
        %1621 = vset.pattern.permute.xlu0 0
        %1622 = vperm.xlu0 %1621, %v1611
        %v1623 = vpop.permute.xlu0 %1622
        %1624 = vset.pattern.permute.xlu0 0
        %1625 = vperm.xlu0 %1624, %v1612
        %v1626 = vpop.permute.xlu0 %1625
        %1627 = vset.pattern.permute.xlu0 0
        %1628 = vperm.xlu0 %1627, %v1613
        %v1629 = vpop.permute.xlu0 %1628
        %1630 = vset.pattern.permute.xlu0 0
        %1631 = vperm.xlu0 %1630, %v1614
        %v1632 = vpop.permute.xlu0 %1631
        %1633 = vset.pattern.permute.xlu0 0
        %1634 = vperm.xlu0 %1633, %v1615
        %v1635 = vpop.permute.xlu0 %1634
        %1636 = vset.pattern.permute.xlu0 0
        %1637 = vperm.xlu0 %1636, %v1616
        %v1638 = vpop.permute.xlu0 %1637
        %1639 = vset.pattern.permute.xlu0 0
        %1640 = vperm.xlu0 %1639, %v1617
        %v1641 = vpop.permute.xlu0 %1640
        %vm1642 = vcmp.eq.s32.totalorder %v1497, %v1620
        %vm1643 = vcmp.eq.s32.totalorder %v1497, %v1623
        %vm1644 = vcmp.eq.s32.totalorder %v1497, %v1626
        %vm1645 = vcmp.eq.s32.totalorder %v1497, %v1629
        %vm1646 = vcmp.eq.s32.totalorder %v1497, %v1632
        %vm1647 = vcmp.eq.s32.totalorder %v1497, %v1635
        %vm1648 = vcmp.eq.s32.totalorder %v1497, %v1638
        %vm1649 = vcmp.eq.s32.totalorder %v1497, %v1641
        %v1650 = vsel %vm1642, %v1371, 0.0
        %v1651 = vsel %vm1643, %v1373, 0.0
        %v1652 = vsel %vm1644, %v1376, 0.0
        %v1653 = vsel %vm1645, %v1378, 0.0
        %v1654 = vsel %vm1646, %v1381, 0.0
        %v1655 = vsel %vm1647, %v1383, 0.0
        %v1656 = vsel %vm1648, %v1386, 0.0
        %v1657 = vsel %vm1649, %v1388, 0.0
        %v1658 = vadd.f32 %v1570, %v1650
        %v1659 = vadd.f32 %v1571, %v1651
        %v1660 = vadd.f32 %v1572, %v1652
        %v1661 = vadd.f32 %v1573, %v1653
        %v1662 = vadd.f32 %v1574, %v1654
        %v1663 = vadd.f32 %v1575, %v1655
        %v1664 = vadd.f32 %v1576, %v1656
        %v1665 = vadd.f32 %v1577, %v1657
        %1666 = vst [vmem:[#allocation3] sm:$0xff] %v1422
        %1667 = vst [vmem:[#allocation3 + $0x8] sm:$0xff] %v1423
        %1668 = vst [vmem:[#allocation3 + $0x10] sm:$0xff] %v1424
        %1669 = vst [vmem:[#allocation3 + $0x18] sm:$0xff] %v1425
        %1670 = vst [vmem:[#allocation3 + $0x20] sm:$0xff] %v1426
        %1671 = vst [vmem:[#allocation3 + $0x28] sm:$0xff] %v1427
        %1672 = vst [vmem:[#allocation3 + $0x30] sm:$0xff] %v1428
        %1673 = vst [vmem:[#allocation3 + $0x38] sm:$0xff] %v1429
        %1674 = vst [vmem:[#allocation4] sm:$0xff] %v1602
        %1675 = vst [vmem:[#allocation4 + $0x8] sm:$0xff] %v1603
        %1676 = vst [vmem:[#allocation4 + $0x10] sm:$0xff] %v1604
        %1677 = vst [vmem:[#allocation4 + $0x18] sm:$0xff] %v1605
        %1678 = vst [vmem:[#allocation4 + $0x20] sm:$0xff] %v1606
        %1679 = vst [vmem:[#allocation4 + $0x28] sm:$0xff] %v1607
        %1680 = vst [vmem:[#allocation4 + $0x30] sm:$0xff] %v1608
        %1681 = vst [vmem:[#allocation4 + $0x38] sm:$0xff] %v1609
        %1682 = vst [vmem:[#allocation5] sm:$0xff] %v1658
        %1683 = vst [vmem:[#allocation5 + $0x8] sm:$0xff] %v1659
        %1684 = vst [vmem:[#allocation5 + $0x10] sm:$0xff] %v1660
        %1685 = vst [vmem:[#allocation5 + $0x18] sm:$0xff] %v1661
        %1686 = vst [vmem:[#allocation5 + $0x20] sm:$0xff] %v1662
        %1687 = vst [vmem:[#allocation5 + $0x28] sm:$0xff] %v1663
        %1688 = vst [vmem:[#allocation5 + $0x30] sm:$0xff] %v1664
        %1689 = vst [vmem:[#allocation5 + $0x38] sm:$0xff] %v1665
        %p1690 = scmp.eq.s32.totalorder %s34, 1
        // Predicated region
        $region73: #{tpu_custom_call.1} parent=51 // pred_check
          %p1691 = pneg %p1690
        $region74: #{tpu_custom_call.1} parent=51 // pred_check_branch
          %1693 = sbr.rel (%p1691) target = $region76
        $region75: #{tpu_custom_call.1} parent=51 // pred_region
          %v1694 = vld [vmem:[#allocation3] sm:$0xff]
          %v1695 = vld [vmem:[#allocation3 + $0x8] sm:$0xff]
          %v1696 = vld [vmem:[#allocation3 + $0x10] sm:$0xff]
          %v1697 = vld [vmem:[#allocation3 + $0x18] sm:$0xff]
          %v1698 = vld [vmem:[#allocation3 + $0x20] sm:$0xff]
          %v1699 = vld [vmem:[#allocation3 + $0x28] sm:$0xff]
          %v1700 = vld [vmem:[#allocation3 + $0x30] sm:$0xff]
          %v1701 = vld [vmem:[#allocation3 + $0x38] sm:$0xff]
          %1702 = vmax.xlane.f32.xlu0 %v1694
          %v1703 = vpop.xlane.xlu0 %1702
          %1704 = vmax.xlane.f32.xlu0 %v1695
          %v1705 = vpop.xlane.xlu0 %1704
          %1706 = vmax.xlane.f32.xlu0 %v1696
          %v1707 = vpop.xlane.xlu0 %1706
          %1708 = vmax.xlane.f32.xlu0 %v1697
          %v1709 = vpop.xlane.xlu0 %1708
          %1710 = vmax.xlane.f32.xlu0 %v1698
          %v1711 = vpop.xlane.xlu0 %1710
          %1712 = vmax.xlane.f32.xlu0 %v1699
          %v1713 = vpop.xlane.xlu0 %1712
          %1714 = vmax.xlane.f32.xlu0 %v1700
          %v1715 = vpop.xlane.xlu0 %1714
          %1716 = vmax.xlane.f32.xlu0 %v1701
          %v1717 = vpop.xlane.xlu0 %1716
          %v1718 = vld [vmem:[#allocation4] sm:$0xff]
          %v1719 = vld [vmem:[#allocation4 + $0x8] sm:$0xff]
          %v1720 = vld [vmem:[#allocation4 + $0x10] sm:$0xff]
          %v1721 = vld [vmem:[#allocation4 + $0x18] sm:$0xff]
          %v1722 = vld [vmem:[#allocation4 + $0x20] sm:$0xff]
          %v1723 = vld [vmem:[#allocation4 + $0x28] sm:$0xff]
          %v1724 = vld [vmem:[#allocation4 + $0x30] sm:$0xff]
          %v1725 = vld [vmem:[#allocation4 + $0x38] sm:$0xff]
          %v1726 = vsub.f32 %v1694, %v1703
          %v1727 = vsub.f32 %v1695, %v1705
          %v1728 = vsub.f32 %v1696, %v1707
          %v1729 = vsub.f32 %v1697, %v1709
          %v1730 = vsub.f32 %v1698, %v1711
          %v1731 = vsub.f32 %v1699, %v1713
          %v1732 = vsub.f32 %v1700, %v1715
          %v1733 = vsub.f32 %v1701, %v1717
          %v1734 = vmul.f32 %v1726, 1.442695
          %v1735 = vpow.pop %v1734
          %v1736 = vmul.f32 %v1727, 1.442695
          %v1737 = vpow.pop %v1736
          %v1738 = vmul.f32 %v1728, 1.442695
          %v1739 = vpow.pop %v1738
          %v1740 = vmul.f32 %v1729, 1.442695
          %v1741 = vpow.pop %v1740
          %v1742 = vmul.f32 %v1730, 1.442695
          %v1743 = vpow.pop %v1742
          %v1744 = vmul.f32 %v1731, 1.442695
          %v1745 = vpow.pop %v1744
          %v1746 = vmul.f32 %v1732, 1.442695
          %v1747 = vpow.pop %v1746
          %v1748 = vmul.f32 %v1733, 1.442695
          %v1749 = vpow.pop %v1748
          %v1750 = vmul.f32 %v1718, %v1735
          %v1751 = vmul.f32 %v1719, %v1737
          %v1752 = vmul.f32 %v1720, %v1739
          %v1753 = vmul.f32 %v1721, %v1741
          %v1754 = vmul.f32 %v1722, %v1743
          %v1755 = vmul.f32 %v1723, %v1745
          %v1756 = vmul.f32 %v1724, %v1747
          %v1757 = vmul.f32 %v1725, %v1749
          %1758 = vadd.xlane.f32.xlu0 %v1750
          %v1759 = vpop.xlane.xlu0 %1758
          %1760 = vadd.xlane.f32.xlu0 %v1751
          %v1761 = vpop.xlane.xlu0 %1760
          %1762 = vadd.xlane.f32.xlu0 %v1752
          %v1763 = vpop.xlane.xlu0 %1762
          %1764 = vadd.xlane.f32.xlu0 %v1753
          %v1765 = vpop.xlane.xlu0 %1764
          %1766 = vadd.xlane.f32.xlu0 %v1754
          %v1767 = vpop.xlane.xlu0 %1766
          %1768 = vadd.xlane.f32.xlu0 %v1755
          %v1769 = vpop.xlane.xlu0 %1768
          %1770 = vadd.xlane.f32.xlu0 %v1756
          %v1771 = vpop.xlane.xlu0 %1770
          %1772 = vadd.xlane.f32.xlu0 %v1757
          %v1773 = vpop.xlane.xlu0 %1772
          %v1774 = vld [vmem:[#allocation5] sm:$0xff]
          %v1775 = vld [vmem:[#allocation5 + $0x8] sm:$0xff]
          %v1776 = vld [vmem:[#allocation5 + $0x10] sm:$0xff]
          %v1777 = vld [vmem:[#allocation5 + $0x18] sm:$0xff]
          %v1778 = vld [vmem:[#allocation5 + $0x20] sm:$0xff]
          %v1779 = vld [vmem:[#allocation5 + $0x28] sm:$0xff]
          %v1780 = vld [vmem:[#allocation5 + $0x30] sm:$0xff]
          %v1781 = vld [vmem:[#allocation5 + $0x38] sm:$0xff]
          %1782 = vadd.xlane.f32.xlu0 %v1774
          %v1783 = vpop.xlane.xlu0 %1782
          %1784 = vadd.xlane.f32.xlu0 %v1775
          %v1785 = vpop.xlane.xlu0 %1784
          %1786 = vadd.xlane.f32.xlu0 %v1776
          %v1787 = vpop.xlane.xlu0 %1786
          %1788 = vadd.xlane.f32.xlu0 %v1777
          %v1789 = vpop.xlane.xlu0 %1788
          %1790 = vadd.xlane.f32.xlu0 %v1778
          %v1791 = vpop.xlane.xlu0 %1790
          %1792 = vadd.xlane.f32.xlu0 %v1779
          %v1793 = vpop.xlane.xlu0 %1792
          %1794 = vadd.xlane.f32.xlu0 %v1780
          %v1795 = vpop.xlane.xlu0 %1794
          %1796 = vadd.xlane.f32.xlu0 %v1781
          %v1797 = vpop.xlane.xlu0 %1796
          %vm1798 = vcmp.ne.s32.totalorder %v1478, 4294967196
          %vm1799 = vcmp.ne.s32.totalorder %v1479, 4294967196
          %vm1800 = vcmp.ne.s32.totalorder %v1480, 4294967196
          %vm1801 = vcmp.ne.s32.totalorder %v1481, 4294967196
          %vm1802 = vcmp.ne.s32.totalorder %v1482, 4294967196
          %vm1803 = vcmp.ne.s32.totalorder %v1483, 4294967196
          %vm1804 = vcmp.ne.s32.totalorder %v1484, 4294967196
          %vm1805 = vcmp.ne.s32.totalorder %v1485, 4294967196
          %v1806 = vsel %vm1798, 1, 0
          %v1807 = vsel %vm1799, 1, 0
          %v1808 = vsel %vm1800, 1, 0
          %v1809 = vsel %vm1801, 1, 0
          %v1810 = vsel %vm1802, 1, 0
          %v1811 = vsel %vm1803, 1, 0
          %v1812 = vsel %vm1804, 1, 0
          %v1813 = vsel %vm1805, 1, 0
          %v1814 = vcvt.s32.f32 %v1806
          %v1815 = vcvt.s32.f32 %v1807
          %v1816 = vcvt.s32.f32 %v1808
          %v1817 = vcvt.s32.f32 %v1809
          %v1818 = vcvt.s32.f32 %v1810
          %v1819 = vcvt.s32.f32 %v1811
          %v1820 = vcvt.s32.f32 %v1812
          %v1821 = vcvt.s32.f32 %v1813
          %v1822 = vlog2.pop %v1759
          %v1823 = vmul.f32 %v1822, 0.6931472
          %v1824 = vlog2.pop %v1761
          %v1825 = vmul.f32 %v1824, 0.6931472
          %v1826 = vlog2.pop %v1763
          %v1827 = vmul.f32 %v1826, 0.6931472
          %v1828 = vlog2.pop %v1765
          %v1829 = vmul.f32 %v1828, 0.6931472
          %v1830 = vlog2.pop %v1767
          %v1831 = vmul.f32 %v1830, 0.6931472
          %v1832 = vlog2.pop %v1769
          %v1833 = vmul.f32 %v1832, 0.6931472
          %v1834 = vlog2.pop %v1771
          %v1835 = vmul.f32 %v1834, 0.6931472
          %v1836 = vlog2.pop %v1773
          %v1837 = vmul.f32 %v1836, 0.6931472
          %v1838 = vadd.f32 %v1703, %v1823
          %v1839 = vadd.f32 %v1705, %v1825
          %v1840 = vadd.f32 %v1707, %v1827
          %v1841 = vadd.f32 %v1709, %v1829
          %v1842 = vadd.f32 %v1711, %v1831
          %v1843 = vadd.f32 %v1713, %v1833
          %v1844 = vadd.f32 %v1715, %v1835
          %v1845 = vadd.f32 %v1717, %v1837
          %v1846 = vsub.f32 %v1838, %v1783
          %v1847 = vsub.f32 %v1839, %v1785
          %v1848 = vsub.f32 %v1840, %v1787
          %v1849 = vsub.f32 %v1841, %v1789
          %v1850 = vsub.f32 %v1842, %v1791
          %v1851 = vsub.f32 %v1843, %v1793
          %v1852 = vsub.f32 %v1844, %v1795
          %v1853 = vsub.f32 %v1845, %v1797
          %v1854 = vmul.f32 %v1846, %v1814
          %v1855 = vmul.f32 %v1847, %v1815
          %v1856 = vmul.f32 %v1848, %v1816
          %v1857 = vmul.f32 %v1849, %v1817
          %v1858 = vmul.f32 %v1850, %v1818
          %v1859 = vmul.f32 %v1851, %v1819
          %v1860 = vmul.f32 %v1852, %v1820
          %v1861 = vmul.f32 %v1853, %v1821
          %vm1862 = vcmask 7168
          %1863 = vst.msk [vmem:[%s491] sm:$0xff] %vm1862, %v1854
          %1864 = vst.msk [vmem:[%s491 + $0x8] sm:$0xff] %vm1862, %v1855
          %1865 = vst.msk [vmem:[%s491 + $0x10] sm:$0xff] %vm1862, %v1856
          %1866 = vst.msk [vmem:[%s491 + $0x18] sm:$0xff] %vm1862, %v1857
          %1867 = vst.msk [vmem:[%s491 + $0x20] sm:$0xff] %vm1862, %v1858
          %1868 = vst.msk [vmem:[%s491 + $0x28] sm:$0xff] %vm1862, %v1859
          %1869 = vst.msk [vmem:[%s491 + $0x30] sm:$0xff] %vm1862, %v1860
          %1870 = vst.msk [vmem:[%s491 + $0x38] sm:$0xff] %vm1862, %v1861
        $region76: #{tpu_custom_call.1} parent=51 // pred_fallthru
          _
        %s1871 = sand.u32 %s239, 1
        %s1872 = scalar_lea.sflag [#allocation8], %s1871
        %s1873 = sand.u32 %s239, 1
        %s1874 = smul.addr %s1873, 128
        %s1875 = scalar_lea.vmem [#allocation14], %s1874
        %s1876 = smul.u32 8, %s33
        %p1877 = scmp.lt.s32.totalorder %s1876, 15
        %s1878 = scalar_select %p1877, %s1876, 15
        %s1879 = smul.addr %s1878, 8
        %s1880 = scalar_lea.vmem %s9, %s1879
        // Predicated region
        $region77: #{tpu_custom_call.1} parent=51 // pred_check
          %p1881 = pneg %p249
        $region78: #{tpu_custom_call.1} parent=51 // pred_check_branch
          %1883 = sbr.rel (%p1881) target = $region80
        $region79: #{tpu_custom_call.1} parent=51 // pred_region
          %s1884 = smul.u32 8, %s33
          %s1885 = smul.u32 2, %s34
          %1887 = vsyncadd %s1872, 0
          %s1888 = smul.addr %s1884, 4
          %s1889 = sadd.s32 %s1885, %s1888
          %s1890 = smul.addr %s1889, 8
          %s1891 = scalar_lea.hbm %s8, %s1890
          %s1892 = sshll.u32 %s1875, 4
          %s1893 = int_to_ptr.vmem [resolvable:$true] %s1892
          %s1894 = sshll.u32 %s1891, 4
          %s1895 = int_to_ptr.hbm [resolvable:$true] %s1894
          %1900 = dma.vmem_to_hbm [thread:$0]  %s1893, 2048, %s1895, %s1872, 256, 512, 16
        $region80: #{tpu_custom_call.1} parent=51 // pred_fallthru
          _
        // Predicated region
        $region81: #{tpu_custom_call.1} parent=51 // pred_check
          %p1901 = pneg %p275
        $region82: #{tpu_custom_call.1} parent=51 // pred_check_branch
          %1903 = sbr.rel (%p1901) target = $region84
        $region83: #{tpu_custom_call.1} parent=51 // pred_region
          %s1904 = smul.u32 8, %s33
        $region84: #{tpu_custom_call.1} parent=51 // pred_fallthru
          _
      $region52: #{tpu_custom_call.1} parent=5 // pred_fallthru
        _
      %p1905 = scmp.le.s32.totalorder 2, %s24
      // Predicated region
      $region85: #{tpu_custom_call.1} parent=5 // pred_check
        %p1906 = pneg %p1905
      $region86: #{tpu_custom_call.1} parent=5 // pred_check_branch
        %1908 = sbr.rel (%p1906) target = $region88
      $region87: #{tpu_custom_call.1} parent=5 // pred_region
        %s1909 = ssub.s32 %s24, 2
        // Predicated region
        $region89: #{tpu_custom_call.1} parent=87 // pred_check
          %p1910 = pneg %p255
        $region90: #{tpu_custom_call.1} parent=87 // pred_check_branch
          %1912 = sbr.rel (%p1910) target = $region92
        $region91: #{tpu_custom_call.1} parent=87 // pred_region
          %s1913 = sand.u32 %s240, 1
          %s1914 = scalar_lea.sflag [#allocation8], %s1913
          %s1915 = sand.u32 %s240, 1
          %s1916 = smul.addr %s1915, 128
          %s1917 = scalar_lea.vmem [#allocation14], %s1916
          %1919 = dma.done %s1914, 2048
        $region92: #{tpu_custom_call.1} parent=87 // pred_fallthru
          _
        // Predicated region
        $region93: #{tpu_custom_call.1} parent=87 // pred_check
          %p1920 = pneg %p281
        $region94: #{tpu_custom_call.1} parent=87 // pred_check_branch
          %1922 = sbr.rel (%p1920) target = $region96
        $region95: #{tpu_custom_call.1} parent=87 // pred_region
          %s1923 = smul.u32 8, %s35
          %p1924 = scmp.lt.s32.totalorder %s1923, 15
          %s1925 = scalar_select %p1924, %s1923, 15
          %s1926 = smul.addr %s1925, 8
          %s1927 = scalar_lea.vmem %s9, %s1926
        $region96: #{tpu_custom_call.1} parent=87 // pred_fallthru
          _
      $region88: #{tpu_custom_call.1} parent=5 // pred_fallthru
        _
    $region6: #{tpu_custom_call.1} parent=1 // loop_footer
      %s28 = sadd.s32 1, %s24
    $region7: #{tpu_custom_call.1} parent=1 // loop_footer_branch
      %23 = sbr.rel target = $region3
    $region8: #{tpu_custom_call.1} parent=1 // loop_exit
      _
    %1928 = vsyncpa [#allocation7], 1
    %s1929 = scalar_lea.sflag [#allocation7], 1
    %1930 = vsyncpa %s1929, 1
    %1931 = vsyncpa [#allocation10], 1
    %1932 = vsyncpa [#allocation13], 1
    %s1933 = scalar_lea.sflag [#allocation13], 1
    %1934 = vsyncpa %s1933, 1
    %1935 = vsyncpa [#allocation8], 1
    %s1936 = scalar_lea.sflag [#allocation8], 1
    %1937 = vsyncpa %s1936, 1

</llo_original>
